<compile_context>
chip_gen: v5e
topology: v5e:2x2
jax: 0.10.0
libtpu: 0.0.40
codegen_flags: <defaults>
</compile_context>

<pallas_src>
import functools

import jax
import jax.numpy as jnp
from jax.experimental import pallas as pl
from jax.experimental.pallas import tpu as pltpu

# ----------------- synthetic backbone config (small shapes) -----------------
B, C, H, W = 2, 4, 16, 16
PATCH = 4
N_TOK = (H // PATCH) * (W // PATCH)      # 16 tokens
CPP = C * PATCH * PATCH                  # 64 patch features
D = 32                                   # embed dim
HEADS = 2
HEAD_DIM = D // HEADS                    # 16
DEPTH = 2
MLP_HID = 4 * D                          # 128
EPS = 1e-6
SCALE = 1.0 / (HEAD_DIM ** 0.5)


def _gelu_tanh(x):
    # tanh-approximation GELU (TODO(synk): exact erf GELU if the backbone used nn.GELU default)
    c = 0.7978845608028654  # sqrt(2/pi)
    return 0.5 * x * (1.0 + jnp.tanh(c * (x + 0.044715 * x * x * x)))


def _ln(x, g, b):
    mu = jnp.mean(x, axis=-1, keepdims=True)
    var = jnp.mean(jnp.square(x - mu), axis=-1, keepdims=True)
    return (x - mu) * jax.lax.rsqrt(var + EPS) * g + b


# ----------------------------- fused Pallas kernel ----------------------------
def _fused_vit_kernel(patches_ref, pos_ref, pw_ref, pb_ref,
                      ln1_g_ref, ln1_b_ref, qkv_w_ref, qkv_b_ref,
                      proj_w_ref, proj_b_ref, ln2_g_ref, ln2_b_ref,
                      fc1_w_ref, fc1_b_ref, fc2_w_ref, fc2_b_ref,
                      ng_ref, nb_ref, out_ref):
    f32 = jnp.float32

    # Patch embedding + positional embedding for this batch element: (N_TOK, D)
    x = jnp.dot(patches_ref[0].astype(f32), pw_ref[...].astype(f32),
                preferred_element_type=f32) + pb_ref[...].astype(f32)
    x = x + pos_ref[...].astype(f32)

    for l in range(DEPTH):                                   # static unroll (DEPTH = 2)
        # ---------------- attention ----------------
        h = _ln(x, ln1_g_ref[l].astype(f32), ln1_b_ref[l].astype(f32))
        qkv = jnp.dot(h, qkv_w_ref[l].astype(f32),
                      preferred_element_type=f32) + qkv_b_ref[l].astype(f32)   # (N, 3D)

        proj_w = proj_w_ref[l].astype(f32)                   # (D, D)
        acc = jnp.zeros((N_TOK, D), f32)
        for hh in range(HEADS):                              # static unroll (HEADS = 2)
            q = qkv[:, hh * HEAD_DIM:(hh + 1) * HEAD_DIM]
            k = qkv[:, D + hh * HEAD_DIM:D + (hh + 1) * HEAD_DIM]
            v = qkv[:, 2 * D + hh * HEAD_DIM:2 * D + (hh + 1) * HEAD_DIM]
            # scores via dot_general contracting last dims (no explicit k transpose)
            s = jax.lax.dot_general(q, k, (((1,), (1,)), ((), ())),
                                    preferred_element_type=f32) * SCALE
            s = s - jnp.max(s, axis=-1, keepdims=True)
            e = jnp.exp(s)
            p = e * pl.reciprocal(jnp.sum(e, axis=-1, keepdims=True), approx=True)
            hv = jnp.dot(p, v, preferred_element_type=f32)   # (N, HEAD_DIM)
            # head merge fused into the projection: per-head row-slice of proj_w
            acc = acc + jnp.dot(hv, proj_w[hh * HEAD_DIM:(hh + 1) * HEAD_DIM, :],
                                preferred_element_type=f32)
        x = x + acc + proj_b_ref[l].astype(f32)

        # ---------------- MLP ----------------
        h = _ln(x, ln2_g_ref[l].astype(f32), ln2_b_ref[l].astype(f32))
        h = jnp.dot(h, fc1_w_ref[l].astype(f32),
                    preferred_element_type=f32) + fc1_b_ref[l].astype(f32)
        h = _gelu_tanh(h)
        h = jnp.dot(h, fc2_w_ref[l].astype(f32),
                    preferred_element_type=f32) + fc2_b_ref[l].astype(f32)
        x = x + h

    # Global average pool over tokens + final LayerNorm -> the 'outcome' features.
    pooled = jnp.mean(x, axis=0, keepdims=True)              # (1, D)
    out_ref[0] = _ln(pooled, ng_ref[...].astype(f32),
                     nb_ref[...].astype(f32)).astype(out_ref.dtype)


def _full_spec(a):
    zeros = (0,) * a.ndim
    return pl.BlockSpec(a.shape, lambda b, _z=zeros: _z)


# ----------------------------- parameters ------------------------------------
def init_params(key):
    def nrm(k, shape):
        return 0.02 * jax.random.normal(k, shape, jnp.float32)

    keys = iter(jax.random.split(key, 8 + DEPTH * 8))
    params = {
        "patch_w": nrm(next(keys), (CPP, D)),
        "patch_b": jnp.zeros((D,), jnp.float32),
        "pos": nrm(next(keys), (1, N_TOK, D)),
        "norm_g": jnp.ones((D,), jnp.float32),
        "norm_b": jnp.zeros((D,), jnp.float32),
        "blocks": [],
    }
    for _ in range(DEPTH):
        params["blocks"].append({
            "ln1_g": jnp.ones((D,), jnp.float32), "ln1_b": jnp.zeros((D,), jnp.float32),
            "qkv_w": nrm(next(keys), (D, 3 * D)), "qkv_b": jnp.zeros((3 * D,), jnp.float32),
            "proj_w": nrm(next(keys), (D, D)), "proj_b": jnp.zeros((D,), jnp.float32),
            "ln2_g": jnp.ones((D,), jnp.float32), "ln2_b": jnp.zeros((D,), jnp.float32),
            "fc1_w": nrm(next(keys), (D, MLP_HID)), "fc1_b": jnp.zeros((MLP_HID,), jnp.float32),
            "fc2_w": nrm(next(keys), (MLP_HID, D)), "fc2_b": jnp.zeros((D,), jnp.float32),
        })
    return params


# -------------------------- forward (single fused Pallas call) -----------------
def simvit_wrapper_forward(params, images):
    """Equivalent of SimViTWrapper.forward: {3: backbone.forward_features(images)['outcome']}."""
    Bb = images.shape[0]
    # Patch unfold glue (one XLA reshape/transpose feeding the kernel):
    # NCHW -> (B, N, C*p*p) with (C, ph, pw) flatten order == Conv2d weight order.
    patches = images.reshape(Bb, C, H // PATCH, PATCH, W // PATCH, PATCH)
    patches = patches.transpose(0, 2, 4, 1, 3, 5).reshape(Bb, N_TOK, CPP)

    blocks = params["blocks"]
    stack_w = lambda name: jnp.stack([blk[name] for blk in blocks])            # (DEPTH, ..., ...)
    stack_v = lambda name: jnp.stack([blk[name] for blk in blocks])[:, None, :]  # (DEPTH, 1, K)

    operands = [
        patches,                                   # (B, N, CPP)
        params["pos"][0],                          # (N, D)
        params["patch_w"],                         # (CPP, D)
        params["patch_b"].reshape(1, D),           # (1, D)
        stack_v("ln1_g"), stack_v("ln1_b"),        # (DEPTH, 1, D)
        stack_w("qkv_w"), stack_v("qkv_b"),        # (DEPTH, D, 3D), (DEPTH, 1, 3D)
        stack_w("proj_w"), stack_v("proj_b"),      # (DEPTH, D, D),  (DEPTH, 1, D)
        stack_v("ln2_g"), stack_v("ln2_b"),        # (DEPTH, 1, D)
        stack_w("fc1_w"), stack_v("fc1_b"),        # (DEPTH, D, H),  (DEPTH, 1, H)
        stack_w("fc2_w"), stack_v("fc2_b"),        # (DEPTH, H, D),  (DEPTH, 1, D)
        params["norm_g"].reshape(1, D),            # (1, D)
        params["norm_b"].reshape(1, D),            # (1, D)
    ]

    in_specs = [pl.BlockSpec((1, N_TOK, CPP), lambda b: (b, 0, 0))] \
        + [_full_spec(a) for a in operands[1:]]

    out = pl.pallas_call(
        _fused_vit_kernel,
        out_shape=jax.ShapeDtypeStruct((Bb, 1, D), jnp.float32),
        grid=(Bb,),
        in_specs=in_specs,
        out_specs=pl.BlockSpec((1, 1, D), lambda b: (b, 0, 0)),
        compiler_params=pltpu.CompilerParams(dimension_semantics=("parallel",)),
    )(*operands)

    return {3: out.reshape(Bb, D)}


# -------------------------- pure-JAX reference ---------------------------------
def _ref_forward(params, images):
    def ln(x, g, b):
        mu = x.mean(-1, keepdims=True)
        var = ((x - mu) ** 2).mean(-1, keepdims=True)
        return (x - mu) * jax.lax.rsqrt(var + EPS) * g + b

    Bb = images.shape[0]
    x = images.reshape(Bb, C, H // PATCH, PATCH, W // PATCH, PATCH)
    x = x.transpose(0, 2, 4, 1, 3, 5).reshape(Bb, N_TOK, CPP)
    x = x @ params["patch_w"] + params["patch_b"]
    x = x + params["pos"]
    for blk in params["blocks"]:
        h = ln(x, blk["ln1_g"], blk["ln1_b"])
        qkv = h @ blk["qkv_w"] + blk["qkv_b"]
        qkv = qkv.reshape(Bb, N_TOK, 3, HEADS, HEAD_DIM).transpose(2, 0, 3, 1, 4)
        q, k, v = qkv[0], qkv[1], qkv[2]
        s = jnp.einsum("bhqd,bhkd->bhqk", q, k) * SCALE
        p = jax.nn.softmax(s, axis=-1)
        o = jnp.einsum("bhqk,bhkd->bhqd", p, v).transpose(0, 2, 1, 3).reshape(Bb, N_TOK, D)
        x = x + (o @ blk["proj_w"] + blk["proj_b"])
        h = ln(x, blk["ln2_g"], blk["ln2_b"])
        h = _gelu_tanh(h @ blk["fc1_w"] + blk["fc1_b"])
        x = x + (h @ blk["fc2_w"] + blk["fc2_b"])
    pooled = x.mean(axis=1)
    return {3: ln(pooled, params["norm_g"], params["norm_b"])}


if __name__ == "__main__":
    root = jax.random.PRNGKey(0)
    k_img, k_par = jax.random.split(root)
    images = jax.random.normal(k_img, (B, C, H, W), jnp.float32)
    params = init_params(k_par)

    fwd = jax.jit(simvit_wrapper_forward)
    out = fwd(params, images)
    out3 = jax.block_until_ready(out[3])
    assert out3.shape == (B, D), out3.shape

    ref3 = _ref_forward(params, images)[3]
    # approx reciprocal in the softmax denominator slightly perturbs outputs -> modest tolerance
    assert jnp.allclose(out3, ref3, atol=2e-3, rtol=2e-3), float(jnp.abs(out3 - ref3).max())

    print("KERNEL_OK")
</pallas_src>

<mosaic_0001>
module attributes {stable_mosaic.version = 11 : i64} {
  func.func @_fused_vit_kernel(%arg0: i32, %arg1: memref<1x16x64xf32, #tpu.memory_space<vmem>>, %arg2: memref<16x32xf32, #tpu.memory_space<vmem>>, %arg3: memref<64x32xf32, #tpu.memory_space<vmem>>, %arg4: memref<1x32xf32, #tpu.memory_space<vmem>>, %arg5: memref<2x1x32xf32, #tpu.memory_space<vmem>>, %arg6: memref<2x1x32xf32, #tpu.memory_space<vmem>>, %arg7: memref<2x32x96xf32, #tpu.memory_space<vmem>>, %arg8: memref<2x1x96xf32, #tpu.memory_space<vmem>>, %arg9: memref<2x32x32xf32, #tpu.memory_space<vmem>>, %arg10: memref<2x1x32xf32, #tpu.memory_space<vmem>>, %arg11: memref<2x1x32xf32, #tpu.memory_space<vmem>>, %arg12: memref<2x1x32xf32, #tpu.memory_space<vmem>>, %arg13: memref<2x32x128xf32, #tpu.memory_space<vmem>>, %arg14: memref<2x1x128xf32, #tpu.memory_space<vmem>>, %arg15: memref<2x128x32xf32, #tpu.memory_space<vmem>>, %arg16: memref<2x1x32xf32, #tpu.memory_space<vmem>>, %arg17: memref<1x32xf32, #tpu.memory_space<vmem>>, %arg18: memref<1x32xf32, #tpu.memory_space<vmem>>, %arg19: memref<1x1x32xf32, #tpu.memory_space<vmem>>) attributes {dimension_semantics = [#tpu.dimension_semantics<parallel>], iteration_bounds = array<i64: 2>, scalar_prefetch = 0 : i64, scratch_operands = 0 : i64, tpu.core_type = #tpu.core_type<tc>, window_params = [{transform_indices = @transform_0, window_bounds = array<i64: 1, 16, 64>}, {pipeline_mode = #tpu.pipeline_mode<synchronous>, transform_indices = @transform_1, window_bounds = array<i64: 16, 32>}, {pipeline_mode = #tpu.pipeline_mode<synchronous>, transform_indices = @transform_2, window_bounds = array<i64: 64, 32>}, {pipeline_mode = #tpu.pipeline_mode<synchronous>, transform_indices = @transform_3, window_bounds = array<i64: 1, 32>}, {pipeline_mode = #tpu.pipeline_mode<synchronous>, transform_indices = @transform_4, window_bounds = array<i64: 2, 1, 32>}, {pipeline_mode = #tpu.pipeline_mode<synchronous>, transform_indices = @transform_5, window_bounds = array<i64: 2, 1, 32>}, {pipeline_mode = #tpu.pipeline_mode<synchronous>, transform_indices = @transform_6, window_bounds = array<i64: 2, 32, 96>}, {pipeline_mode = #tpu.pipeline_mode<synchronous>, transform_indices = @transform_7, window_bounds = array<i64: 2, 1, 96>}, {pipeline_mode = #tpu.pipeline_mode<synchronous>, transform_indices = @transform_8, window_bounds = array<i64: 2, 32, 32>}, {pipeline_mode = #tpu.pipeline_mode<synchronous>, transform_indices = @transform_9, window_bounds = array<i64: 2, 1, 32>}, {pipeline_mode = #tpu.pipeline_mode<synchronous>, transform_indices = @transform_10, window_bounds = array<i64: 2, 1, 32>}, {pipeline_mode = #tpu.pipeline_mode<synchronous>, transform_indices = @transform_11, window_bounds = array<i64: 2, 1, 32>}, {pipeline_mode = #tpu.pipeline_mode<synchronous>, transform_indices = @transform_12, window_bounds = array<i64: 2, 32, 128>}, {pipeline_mode = #tpu.pipeline_mode<synchronous>, transform_indices = @transform_13, window_bounds = array<i64: 2, 1, 128>}, {pipeline_mode = #tpu.pipeline_mode<synchronous>, transform_indices = @transform_14, window_bounds = array<i64: 2, 128, 32>}, {pipeline_mode = #tpu.pipeline_mode<synchronous>, transform_indices = @transform_15, window_bounds = array<i64: 2, 1, 32>}, {pipeline_mode = #tpu.pipeline_mode<synchronous>, transform_indices = @transform_16, window_bounds = array<i64: 1, 32>}, {pipeline_mode = #tpu.pipeline_mode<synchronous>, transform_indices = @transform_17, window_bounds = array<i64: 1, 32>}, {transform_indices = @transform_18, window_bounds = array<i64: 1, 1, 32>}]} {
    %c0 = arith.constant 0 : index
    %c0_0 = arith.constant 0 : index
    %c0_1 = arith.constant 0 : index
    %0 = vector.load %arg1[%c0, %c0_0, %c0_1] : memref<1x16x64xf32, #tpu.memory_space<vmem>>, vector<1x16x64xf32>
    %1 = vector.shape_cast %0 : vector<1x16x64xf32> to vector<16x64xf32>
    %c0_2 = arith.constant 0 : index
    %c0_3 = arith.constant 0 : index
    %2 = vector.load %arg3[%c0_2, %c0_3] : memref<64x32xf32, #tpu.memory_space<vmem>>, vector<64x32xf32>
    %cst = arith.constant dense<0.000000e+00> : vector<16x32xf32>
    %3 = tpu.matmul %1, %2, %cst {dimension_numbers = #tpu.dot_dimension_numbers<[1], [0], [0], [1], [0, 0, 1, 1], [], []>} : vector<16x64xf32>, vector<64x32xf32>, vector<16x32xf32> -> vector<16x32xf32>
    %c0_4 = arith.constant 0 : index
    %c0_5 = arith.constant 0 : index
    %4 = vector.load %arg4[%c0_4, %c0_5] : memref<1x32xf32, #tpu.memory_space<vmem>>, vector<1x32xf32>
    %5 = vector.broadcast %4 : vector<1x32xf32> to vector<16x32xf32>
    %6 = arith.addf %3, %5 : vector<16x32xf32>
    %c0_6 = arith.constant 0 : index
    %c0_7 = arith.constant 0 : index
    %7 = vector.load %arg2[%c0_6, %c0_7] : memref<16x32xf32, #tpu.memory_space<vmem>>, vector<16x32xf32>
    %8 = arith.addf %6, %7 : vector<16x32xf32>
    %c0_8 = arith.constant 0 : index
    %c0_9 = arith.constant 0 : index
    %c0_10 = arith.constant 0 : index
    %9 = vector.load %arg5[%c0_8, %c0_9, %c0_10] : memref<2x1x32xf32, #tpu.memory_space<vmem>>, vector<1x1x32xf32>
    %10 = vector.shape_cast %9 : vector<1x1x32xf32> to vector<1x32xf32>
    %c0_11 = arith.constant 0 : index
    %c0_12 = arith.constant 0 : index
    %c0_13 = arith.constant 0 : index
    %11 = vector.load %arg6[%c0_11, %c0_12, %c0_13] : memref<2x1x32xf32, #tpu.memory_space<vmem>>, vector<1x1x32xf32>
    %12 = vector.shape_cast %11 : vector<1x1x32xf32> to vector<1x32xf32>
    %cst_14 = arith.constant dense<0.000000e+00> : vector<16xf32>
    %13 = vector.multi_reduction <add>, %8, %cst_14 [1] : vector<16x32xf32> to vector<16xf32>
    %14 = vector.shape_cast %13 : vector<16xf32> to vector<16x1xf32>
    %cst_15 = arith.constant 3.200000e+01 : f32
    %15 = vector.broadcast %cst_15 : f32 to vector<16x1xf32>
    %16 = arith.divf %14, %15 : vector<16x1xf32>
    %17 = vector.broadcast %16 : vector<16x1xf32> to vector<16x32xf32>
    %18 = arith.subf %8, %17 : vector<16x32xf32>
    %19 = arith.mulf %18, %18 : vector<16x32xf32>
    %cst_16 = arith.constant dense<0.000000e+00> : vector<16xf32>
    %20 = vector.multi_reduction <add>, %19, %cst_16 [1] : vector<16x32xf32> to vector<16xf32>
    %21 = vector.shape_cast %20 : vector<16xf32> to vector<16x1xf32>
    %cst_17 = arith.constant 3.200000e+01 : f32
    %22 = vector.broadcast %cst_17 : f32 to vector<16x1xf32>
    %23 = arith.divf %21, %22 : vector<16x1xf32>
    %24 = vector.broadcast %16 : vector<16x1xf32> to vector<16x32xf32>
    %25 = arith.subf %8, %24 : vector<16x32xf32>
    %cst_18 = arith.constant 9.99999997E-7 : f32
    %26 = vector.broadcast %cst_18 : f32 to vector<16x1xf32>
    %27 = arith.addf %23, %26 : vector<16x1xf32>
    %28 = math.rsqrt %27 : vector<16x1xf32>
    %29 = vector.broadcast %28 : vector<16x1xf32> to vector<16x32xf32>
    %30 = arith.mulf %25, %29 : vector<16x32xf32>
    %31 = vector.broadcast %10 : vector<1x32xf32> to vector<16x32xf32>
    %32 = arith.mulf %30, %31 : vector<16x32xf32>
    %33 = vector.broadcast %12 : vector<1x32xf32> to vector<16x32xf32>
    %34 = arith.addf %32, %33 : vector<16x32xf32>
    %c0_19 = arith.constant 0 : index
    %c0_20 = arith.constant 0 : index
    %c0_21 = arith.constant 0 : index
    %35 = vector.load %arg7[%c0_19, %c0_20, %c0_21] : memref<2x32x96xf32, #tpu.memory_space<vmem>>, vector<1x32x96xf32>
    %36 = vector.shape_cast %35 : vector<1x32x96xf32> to vector<32x96xf32>
    %cst_22 = arith.constant dense<0.000000e+00> : vector<16x96xf32>
    %37 = tpu.matmul %34, %36, %cst_22 {dimension_numbers = #tpu.dot_dimension_numbers<[1], [0], [0], [1], [0, 0, 1, 1], [], []>} : vector<16x32xf32>, vector<32x96xf32>, vector<16x96xf32> -> vector<16x96xf32>
    %c0_23 = arith.constant 0 : index
    %c0_24 = arith.constant 0 : index
    %c0_25 = arith.constant 0 : index
    %38 = vector.load %arg8[%c0_23, %c0_24, %c0_25] : memref<2x1x96xf32, #tpu.memory_space<vmem>>, vector<1x1x96xf32>
    %39 = vector.shape_cast %38 : vector<1x1x96xf32> to vector<1x96xf32>
    %40 = vector.broadcast %39 : vector<1x96xf32> to vector<16x96xf32>
    %41 = arith.addf %37, %40 : vector<16x96xf32>
    %c0_26 = arith.constant 0 : index
    %c0_27 = arith.constant 0 : index
    %c0_28 = arith.constant 0 : index
    %42 = vector.load %arg9[%c0_26, %c0_27, %c0_28] : memref<2x32x32xf32, #tpu.memory_space<vmem>>, vector<1x32x32xf32>
    %43 = vector.shape_cast %42 : vector<1x32x32xf32> to vector<32x32xf32>
    %cst_29 = arith.constant 0.000000e+00 : f32
    %44 = vector.broadcast %cst_29 : f32 to vector<16x32xf32>
    %45 = vector.extract_strided_slice %41 {offsets = [0, 0], sizes = [16, 16], strides = [1, 1]} : vector<16x96xf32> to vector<16x16xf32>
    %46 = vector.extract_strided_slice %41 {offsets = [0, 32], sizes = [16, 16], strides = [1, 1]} : vector<16x96xf32> to vector<16x16xf32>
    %47 = vector.extract_strided_slice %41 {offsets = [0, 64], sizes = [16, 16], strides = [1, 1]} : vector<16x96xf32> to vector<16x16xf32>
    %cst_30 = arith.constant dense<0.000000e+00> : vector<16x16xf32>
    %48 = tpu.matmul %45, %46, %cst_30 {dimension_numbers = #tpu.dot_dimension_numbers<[1], [1], [0], [0], [0, 0, 1, 0], [], []>} : vector<16x16xf32>, vector<16x16xf32>, vector<16x16xf32> -> vector<16x16xf32>
    %cst_31 = arith.constant 2.500000e-01 : f32
    %49 = vector.broadcast %cst_31 : f32 to vector<16x16xf32>
    %50 = arith.mulf %48, %49 : vector<16x16xf32>
    %cst_32 = arith.constant dense<0xFF800000> : vector<16xf32>
    %51 = vector.multi_reduction <maximumf>, %50, %cst_32 [1] : vector<16x16xf32> to vector<16xf32>
    %52 = vector.shape_cast %51 : vector<16xf32> to vector<16x1xf32>
    %53 = vector.broadcast %52 : vector<16x1xf32> to vector<16x16xf32>
    %54 = arith.subf %50, %53 : vector<16x16xf32>
    %55 = math.exp %54 : vector<16x16xf32>
    %cst_33 = arith.constant dense<0.000000e+00> : vector<16xf32>
    %56 = vector.multi_reduction <add>, %55, %cst_33 [1] : vector<16x16xf32> to vector<16xf32>
    %57 = vector.shape_cast %56 : vector<16xf32> to vector<16x1xf32>
    %58 = tpu.reciprocal %57 {approx = true} : vector<16x1xf32> -> vector<16x1xf32>
    %59 = vector.broadcast %58 : vector<16x1xf32> to vector<16x16xf32>
    %60 = arith.mulf %55, %59 : vector<16x16xf32>
    %cst_34 = arith.constant dense<0.000000e+00> : vector<16x16xf32>
    %61 = tpu.matmul %60, %47, %cst_34 {dimension_numbers = #tpu.dot_dimension_numbers<[1], [0], [0], [1], [0, 0, 1, 1], [], []>} : vector<16x16xf32>, vector<16x16xf32>, vector<16x16xf32> -> vector<16x16xf32>
    %62 = vector.extract_strided_slice %43 {offsets = [0, 0], sizes = [16, 32], strides = [1, 1]} : vector<32x32xf32> to vector<16x32xf32>
    %cst_35 = arith.constant dense<0.000000e+00> : vector<16x32xf32>
    %63 = tpu.matmul %61, %62, %cst_35 {dimension_numbers = #tpu.dot_dimension_numbers<[1], [0], [0], [1], [0, 0, 1, 1], [], []>} : vector<16x16xf32>, vector<16x32xf32>, vector<16x32xf32> -> vector<16x32xf32>
    %64 = arith.addf %44, %63 : vector<16x32xf32>
    %65 = vector.extract_strided_slice %41 {offsets = [0, 16], sizes = [16, 16], strides = [1, 1]} : vector<16x96xf32> to vector<16x16xf32>
    %66 = vector.extract_strided_slice %41 {offsets = [0, 48], sizes = [16, 16], strides = [1, 1]} : vector<16x96xf32> to vector<16x16xf32>
    %67 = vector.extract_strided_slice %41 {offsets = [0, 80], sizes = [16, 16], strides = [1, 1]} : vector<16x96xf32> to vector<16x16xf32>
    %cst_36 = arith.constant dense<0.000000e+00> : vector<16x16xf32>
    %68 = tpu.matmul %65, %66, %cst_36 {dimension_numbers = #tpu.dot_dimension_numbers<[1], [1], [0], [0], [0, 0, 1, 0], [], []>} : vector<16x16xf32>, vector<16x16xf32>, vector<16x16xf32> -> vector<16x16xf32>
    %cst_37 = arith.constant 2.500000e-01 : f32
    %69 = vector.broadcast %cst_37 : f32 to vector<16x16xf32>
    %70 = arith.mulf %68, %69 : vector<16x16xf32>
    %cst_38 = arith.constant dense<0xFF800000> : vector<16xf32>
    %71 = vector.multi_reduction <maximumf>, %70, %cst_38 [1] : vector<16x16xf32> to vector<16xf32>
    %72 = vector.shape_cast %71 : vector<16xf32> to vector<16x1xf32>
    %73 = vector.broadcast %72 : vector<16x1xf32> to vector<16x16xf32>
    %74 = arith.subf %70, %73 : vector<16x16xf32>
    %75 = math.exp %74 : vector<16x16xf32>
    %cst_39 = arith.constant dense<0.000000e+00> : vector<16xf32>
    %76 = vector.multi_reduction <add>, %75, %cst_39 [1] : vector<16x16xf32> to vector<16xf32>
    %77 = vector.shape_cast %76 : vector<16xf32> to vector<16x1xf32>
    %78 = tpu.reciprocal %77 {approx = true} : vector<16x1xf32> -> vector<16x1xf32>
    %79 = vector.broadcast %78 : vector<16x1xf32> to vector<16x16xf32>
    %80 = arith.mulf %75, %79 : vector<16x16xf32>
    %cst_40 = arith.constant dense<0.000000e+00> : vector<16x16xf32>
    %81 = tpu.matmul %80, %67, %cst_40 {dimension_numbers = #tpu.dot_dimension_numbers<[1], [0], [0], [1], [0, 0, 1, 1], [], []>} : vector<16x16xf32>, vector<16x16xf32>, vector<16x16xf32> -> vector<16x16xf32>
    %82 = vector.extract_strided_slice %43 {offsets = [16, 0], sizes = [16, 32], strides = [1, 1]} : vector<32x32xf32> to vector<16x32xf32>
    %cst_41 = arith.constant dense<0.000000e+00> : vector<16x32xf32>
    %83 = tpu.matmul %81, %82, %cst_41 {dimension_numbers = #tpu.dot_dimension_numbers<[1], [0], [0], [1], [0, 0, 1, 1], [], []>} : vector<16x16xf32>, vector<16x32xf32>, vector<16x32xf32> -> vector<16x32xf32>
    %84 = arith.addf %64, %83 : vector<16x32xf32>
    %85 = arith.addf %8, %84 : vector<16x32xf32>
    %c0_42 = arith.constant 0 : index
    %c0_43 = arith.constant 0 : index
    %c0_44 = arith.constant 0 : index
    %86 = vector.load %arg10[%c0_42, %c0_43, %c0_44] : memref<2x1x32xf32, #tpu.memory_space<vmem>>, vector<1x1x32xf32>
    %87 = vector.shape_cast %86 : vector<1x1x32xf32> to vector<1x32xf32>
    %88 = vector.broadcast %87 : vector<1x32xf32> to vector<16x32xf32>
    %89 = arith.addf %85, %88 : vector<16x32xf32>
    %c0_45 = arith.constant 0 : index
    %c0_46 = arith.constant 0 : index
    %c0_47 = arith.constant 0 : index
    %90 = vector.load %arg11[%c0_45, %c0_46, %c0_47] : memref<2x1x32xf32, #tpu.memory_space<vmem>>, vector<1x1x32xf32>
    %91 = vector.shape_cast %90 : vector<1x1x32xf32> to vector<1x32xf32>
    %c0_48 = arith.constant 0 : index
    %c0_49 = arith.constant 0 : index
    %c0_50 = arith.constant 0 : index
    %92 = vector.load %arg12[%c0_48, %c0_49, %c0_50] : memref<2x1x32xf32, #tpu.memory_space<vmem>>, vector<1x1x32xf32>
    %93 = vector.shape_cast %92 : vector<1x1x32xf32> to vector<1x32xf32>
    %cst_51 = arith.constant dense<0.000000e+00> : vector<16xf32>
    %94 = vector.multi_reduction <add>, %89, %cst_51 [1] : vector<16x32xf32> to vector<16xf32>
    %95 = vector.shape_cast %94 : vector<16xf32> to vector<16x1xf32>
    %cst_52 = arith.constant 3.200000e+01 : f32
    %96 = vector.broadcast %cst_52 : f32 to vector<16x1xf32>
    %97 = arith.divf %95, %96 : vector<16x1xf32>
    %98 = vector.broadcast %97 : vector<16x1xf32> to vector<16x32xf32>
    %99 = arith.subf %89, %98 : vector<16x32xf32>
    %100 = arith.mulf %99, %99 : vector<16x32xf32>
    %cst_53 = arith.constant dense<0.000000e+00> : vector<16xf32>
    %101 = vector.multi_reduction <add>, %100, %cst_53 [1] : vector<16x32xf32> to vector<16xf32>
    %102 = vector.shape_cast %101 : vector<16xf32> to vector<16x1xf32>
    %cst_54 = arith.constant 3.200000e+01 : f32
    %103 = vector.broadcast %cst_54 : f32 to vector<16x1xf32>
    %104 = arith.divf %102, %103 : vector<16x1xf32>
    %105 = vector.broadcast %97 : vector<16x1xf32> to vector<16x32xf32>
    %106 = arith.subf %89, %105 : vector<16x32xf32>
    %cst_55 = arith.constant 9.99999997E-7 : f32
    %107 = vector.broadcast %cst_55 : f32 to vector<16x1xf32>
    %108 = arith.addf %104, %107 : vector<16x1xf32>
    %109 = math.rsqrt %108 : vector<16x1xf32>
    %110 = vector.broadcast %109 : vector<16x1xf32> to vector<16x32xf32>
    %111 = arith.mulf %106, %110 : vector<16x32xf32>
    %112 = vector.broadcast %91 : vector<1x32xf32> to vector<16x32xf32>
    %113 = arith.mulf %111, %112 : vector<16x32xf32>
    %114 = vector.broadcast %93 : vector<1x32xf32> to vector<16x32xf32>
    %115 = arith.addf %113, %114 : vector<16x32xf32>
    %c0_56 = arith.constant 0 : index
    %c0_57 = arith.constant 0 : index
    %c0_58 = arith.constant 0 : index
    %116 = vector.load %arg13[%c0_56, %c0_57, %c0_58] : memref<2x32x128xf32, #tpu.memory_space<vmem>>, vector<1x32x128xf32>
    %117 = vector.shape_cast %116 : vector<1x32x128xf32> to vector<32x128xf32>
    %cst_59 = arith.constant dense<0.000000e+00> : vector<16x128xf32>
    %118 = tpu.matmul %115, %117, %cst_59 {dimension_numbers = #tpu.dot_dimension_numbers<[1], [0], [0], [1], [0, 0, 1, 1], [], []>} : vector<16x32xf32>, vector<32x128xf32>, vector<16x128xf32> -> vector<16x128xf32>
    %c0_60 = arith.constant 0 : index
    %c0_61 = arith.constant 0 : index
    %c0_62 = arith.constant 0 : index
    %119 = vector.load %arg14[%c0_60, %c0_61, %c0_62] : memref<2x1x128xf32, #tpu.memory_space<vmem>>, vector<1x1x128xf32>
    %120 = vector.shape_cast %119 : vector<1x1x128xf32> to vector<1x128xf32>
    %121 = vector.broadcast %120 : vector<1x128xf32> to vector<16x128xf32>
    %122 = arith.addf %118, %121 : vector<16x128xf32>
    %cst_63 = arith.constant 5.000000e-01 : f32
    %123 = vector.broadcast %cst_63 : f32 to vector<16x128xf32>
    %124 = arith.mulf %123, %122 : vector<16x128xf32>
    %cst_64 = arith.constant 4.471500e-02 : f32
    %125 = vector.broadcast %cst_64 : f32 to vector<16x128xf32>
    %126 = arith.mulf %125, %122 : vector<16x128xf32>
    %127 = arith.mulf %126, %122 : vector<16x128xf32>
    %128 = arith.mulf %127, %122 : vector<16x128xf32>
    %129 = arith.addf %122, %128 : vector<16x128xf32>
    %cst_65 = arith.constant 0.797884583 : f32
    %130 = vector.broadcast %cst_65 : f32 to vector<16x128xf32>
    %131 = arith.mulf %130, %129 : vector<16x128xf32>
    %132 = math.tanh %131 : vector<16x128xf32>
    %cst_66 = arith.constant 1.000000e+00 : f32
    %133 = vector.broadcast %cst_66 : f32 to vector<16x128xf32>
    %134 = arith.addf %133, %132 : vector<16x128xf32>
    %135 = arith.mulf %124, %134 : vector<16x128xf32>
    %c0_67 = arith.constant 0 : index
    %c0_68 = arith.constant 0 : index
    %c0_69 = arith.constant 0 : index
    %136 = vector.load %arg15[%c0_67, %c0_68, %c0_69] : memref<2x128x32xf32, #tpu.memory_space<vmem>>, vector<1x128x32xf32>
    %137 = vector.shape_cast %136 : vector<1x128x32xf32> to vector<128x32xf32>
    %cst_70 = arith.constant dense<0.000000e+00> : vector<16x32xf32>
    %138 = tpu.matmul %135, %137, %cst_70 {dimension_numbers = #tpu.dot_dimension_numbers<[1], [0], [0], [1], [0, 0, 1, 1], [], []>} : vector<16x128xf32>, vector<128x32xf32>, vector<16x32xf32> -> vector<16x32xf32>
    %c0_71 = arith.constant 0 : index
    %c0_72 = arith.constant 0 : index
    %c0_73 = arith.constant 0 : index
    %139 = vector.load %arg16[%c0_71, %c0_72, %c0_73] : memref<2x1x32xf32, #tpu.memory_space<vmem>>, vector<1x1x32xf32>
    %140 = vector.shape_cast %139 : vector<1x1x32xf32> to vector<1x32xf32>
    %141 = vector.broadcast %140 : vector<1x32xf32> to vector<16x32xf32>
    %142 = arith.addf %138, %141 : vector<16x32xf32>
    %143 = arith.addf %89, %142 : vector<16x32xf32>
    %c1 = arith.constant 1 : index
    %c0_74 = arith.constant 0 : index
    %c0_75 = arith.constant 0 : index
    %144 = vector.load %arg5[%c1, %c0_74, %c0_75] : memref<2x1x32xf32, #tpu.memory_space<vmem>>, vector<1x1x32xf32>
    %145 = vector.shape_cast %144 : vector<1x1x32xf32> to vector<1x32xf32>
    %c1_76 = arith.constant 1 : index
    %c0_77 = arith.constant 0 : index
    %c0_78 = arith.constant 0 : index
    %146 = vector.load %arg6[%c1_76, %c0_77, %c0_78] : memref<2x1x32xf32, #tpu.memory_space<vmem>>, vector<1x1x32xf32>
    %147 = vector.shape_cast %146 : vector<1x1x32xf32> to vector<1x32xf32>
    %cst_79 = arith.constant dense<0.000000e+00> : vector<16xf32>
    %148 = vector.multi_reduction <add>, %143, %cst_79 [1] : vector<16x32xf32> to vector<16xf32>
    %149 = vector.shape_cast %148 : vector<16xf32> to vector<16x1xf32>
    %cst_80 = arith.constant 3.200000e+01 : f32
    %150 = vector.broadcast %cst_80 : f32 to vector<16x1xf32>
    %151 = arith.divf %149, %150 : vector<16x1xf32>
    %152 = vector.broadcast %151 : vector<16x1xf32> to vector<16x32xf32>
    %153 = arith.subf %143, %152 : vector<16x32xf32>
    %154 = arith.mulf %153, %153 : vector<16x32xf32>
    %cst_81 = arith.constant dense<0.000000e+00> : vector<16xf32>
    %155 = vector.multi_reduction <add>, %154, %cst_81 [1] : vector<16x32xf32> to vector<16xf32>
    %156 = vector.shape_cast %155 : vector<16xf32> to vector<16x1xf32>
    %cst_82 = arith.constant 3.200000e+01 : f32
    %157 = vector.broadcast %cst_82 : f32 to vector<16x1xf32>
    %158 = arith.divf %156, %157 : vector<16x1xf32>
    %159 = vector.broadcast %151 : vector<16x1xf32> to vector<16x32xf32>
    %160 = arith.subf %143, %159 : vector<16x32xf32>
    %cst_83 = arith.constant 9.99999997E-7 : f32
    %161 = vector.broadcast %cst_83 : f32 to vector<16x1xf32>
    %162 = arith.addf %158, %161 : vector<16x1xf32>
    %163 = math.rsqrt %162 : vector<16x1xf32>
    %164 = vector.broadcast %163 : vector<16x1xf32> to vector<16x32xf32>
    %165 = arith.mulf %160, %164 : vector<16x32xf32>
    %166 = vector.broadcast %145 : vector<1x32xf32> to vector<16x32xf32>
    %167 = arith.mulf %165, %166 : vector<16x32xf32>
    %168 = vector.broadcast %147 : vector<1x32xf32> to vector<16x32xf32>
    %169 = arith.addf %167, %168 : vector<16x32xf32>
    %c1_84 = arith.constant 1 : index
    %c0_85 = arith.constant 0 : index
    %c0_86 = arith.constant 0 : index
    %170 = vector.load %arg7[%c1_84, %c0_85, %c0_86] : memref<2x32x96xf32, #tpu.memory_space<vmem>>, vector<1x32x96xf32>
    %171 = vector.shape_cast %170 : vector<1x32x96xf32> to vector<32x96xf32>
    %cst_87 = arith.constant dense<0.000000e+00> : vector<16x96xf32>
    %172 = tpu.matmul %169, %171, %cst_87 {dimension_numbers = #tpu.dot_dimension_numbers<[1], [0], [0], [1], [0, 0, 1, 1], [], []>} : vector<16x32xf32>, vector<32x96xf32>, vector<16x96xf32> -> vector<16x96xf32>
    %c1_88 = arith.constant 1 : index
    %c0_89 = arith.constant 0 : index
    %c0_90 = arith.constant 0 : index
    %173 = vector.load %arg8[%c1_88, %c0_89, %c0_90] : memref<2x1x96xf32, #tpu.memory_space<vmem>>, vector<1x1x96xf32>
    %174 = vector.shape_cast %173 : vector<1x1x96xf32> to vector<1x96xf32>
    %175 = vector.broadcast %174 : vector<1x96xf32> to vector<16x96xf32>
    %176 = arith.addf %172, %175 : vector<16x96xf32>
    %c1_91 = arith.constant 1 : index
    %c0_92 = arith.constant 0 : index
    %c0_93 = arith.constant 0 : index
    %177 = vector.load %arg9[%c1_91, %c0_92, %c0_93] : memref<2x32x32xf32, #tpu.memory_space<vmem>>, vector<1x32x32xf32>
    %178 = vector.shape_cast %177 : vector<1x32x32xf32> to vector<32x32xf32>
    %cst_94 = arith.constant 0.000000e+00 : f32
    %179 = vector.broadcast %cst_94 : f32 to vector<16x32xf32>
    %180 = vector.extract_strided_slice %176 {offsets = [0, 0], sizes = [16, 16], strides = [1, 1]} : vector<16x96xf32> to vector<16x16xf32>
    %181 = vector.extract_strided_slice %176 {offsets = [0, 32], sizes = [16, 16], strides = [1, 1]} : vector<16x96xf32> to vector<16x16xf32>
    %182 = vector.extract_strided_slice %176 {offsets = [0, 64], sizes = [16, 16], strides = [1, 1]} : vector<16x96xf32> to vector<16x16xf32>
    %cst_95 = arith.constant dense<0.000000e+00> : vector<16x16xf32>
    %183 = tpu.matmul %180, %181, %cst_95 {dimension_numbers = #tpu.dot_dimension_numbers<[1], [1], [0], [0], [0, 0, 1, 0], [], []>} : vector<16x16xf32>, vector<16x16xf32>, vector<16x16xf32> -> vector<16x16xf32>
    %cst_96 = arith.constant 2.500000e-01 : f32
    %184 = vector.broadcast %cst_96 : f32 to vector<16x16xf32>
    %185 = arith.mulf %183, %184 : vector<16x16xf32>
    %cst_97 = arith.constant dense<0xFF800000> : vector<16xf32>
    %186 = vector.multi_reduction <maximumf>, %185, %cst_97 [1] : vector<16x16xf32> to vector<16xf32>
    %187 = vector.shape_cast %186 : vector<16xf32> to vector<16x1xf32>
    %188 = vector.broadcast %187 : vector<16x1xf32> to vector<16x16xf32>
    %189 = arith.subf %185, %188 : vector<16x16xf32>
    %190 = math.exp %189 : vector<16x16xf32>
    %cst_98 = arith.constant dense<0.000000e+00> : vector<16xf32>
    %191 = vector.multi_reduction <add>, %190, %cst_98 [1] : vector<16x16xf32> to vector<16xf32>
    %192 = vector.shape_cast %191 : vector<16xf32> to vector<16x1xf32>
    %193 = tpu.reciprocal %192 {approx = true} : vector<16x1xf32> -> vector<16x1xf32>
    %194 = vector.broadcast %193 : vector<16x1xf32> to vector<16x16xf32>
    %195 = arith.mulf %190, %194 : vector<16x16xf32>
    %cst_99 = arith.constant dense<0.000000e+00> : vector<16x16xf32>
    %196 = tpu.matmul %195, %182, %cst_99 {dimension_numbers = #tpu.dot_dimension_numbers<[1], [0], [0], [1], [0, 0, 1, 1], [], []>} : vector<16x16xf32>, vector<16x16xf32>, vector<16x16xf32> -> vector<16x16xf32>
    %197 = vector.extract_strided_slice %178 {offsets = [0, 0], sizes = [16, 32], strides = [1, 1]} : vector<32x32xf32> to vector<16x32xf32>
    %cst_100 = arith.constant dense<0.000000e+00> : vector<16x32xf32>
    %198 = tpu.matmul %196, %197, %cst_100 {dimension_numbers = #tpu.dot_dimension_numbers<[1], [0], [0], [1], [0, 0, 1, 1], [], []>} : vector<16x16xf32>, vector<16x32xf32>, vector<16x32xf32> -> vector<16x32xf32>
    %199 = arith.addf %179, %198 : vector<16x32xf32>
    %200 = vector.extract_strided_slice %176 {offsets = [0, 16], sizes = [16, 16], strides = [1, 1]} : vector<16x96xf32> to vector<16x16xf32>
    %201 = vector.extract_strided_slice %176 {offsets = [0, 48], sizes = [16, 16], strides = [1, 1]} : vector<16x96xf32> to vector<16x16xf32>
    %202 = vector.extract_strided_slice %176 {offsets = [0, 80], sizes = [16, 16], strides = [1, 1]} : vector<16x96xf32> to vector<16x16xf32>
    %cst_101 = arith.constant dense<0.000000e+00> : vector<16x16xf32>
    %203 = tpu.matmul %200, %201, %cst_101 {dimension_numbers = #tpu.dot_dimension_numbers<[1], [1], [0], [0], [0, 0, 1, 0], [], []>} : vector<16x16xf32>, vector<16x16xf32>, vector<16x16xf32> -> vector<16x16xf32>
    %cst_102 = arith.constant 2.500000e-01 : f32
    %204 = vector.broadcast %cst_102 : f32 to vector<16x16xf32>
    %205 = arith.mulf %203, %204 : vector<16x16xf32>
    %cst_103 = arith.constant dense<0xFF800000> : vector<16xf32>
    %206 = vector.multi_reduction <maximumf>, %205, %cst_103 [1] : vector<16x16xf32> to vector<16xf32>
    %207 = vector.shape_cast %206 : vector<16xf32> to vector<16x1xf32>
    %208 = vector.broadcast %207 : vector<16x1xf32> to vector<16x16xf32>
    %209 = arith.subf %205, %208 : vector<16x16xf32>
    %210 = math.exp %209 : vector<16x16xf32>
    %cst_104 = arith.constant dense<0.000000e+00> : vector<16xf32>
    %211 = vector.multi_reduction <add>, %210, %cst_104 [1] : vector<16x16xf32> to vector<16xf32>
    %212 = vector.shape_cast %211 : vector<16xf32> to vector<16x1xf32>
    %213 = tpu.reciprocal %212 {approx = true} : vector<16x1xf32> -> vector<16x1xf32>
    %214 = vector.broadcast %213 : vector<16x1xf32> to vector<16x16xf32>
    %215 = arith.mulf %210, %214 : vector<16x16xf32>
    %cst_105 = arith.constant dense<0.000000e+00> : vector<16x16xf32>
    %216 = tpu.matmul %215, %202, %cst_105 {dimension_numbers = #tpu.dot_dimension_numbers<[1], [0], [0], [1], [0, 0, 1, 1], [], []>} : vector<16x16xf32>, vector<16x16xf32>, vector<16x16xf32> -> vector<16x16xf32>
    %217 = vector.extract_strided_slice %178 {offsets = [16, 0], sizes = [16, 32], strides = [1, 1]} : vector<32x32xf32> to vector<16x32xf32>
    %cst_106 = arith.constant dense<0.000000e+00> : vector<16x32xf32>
    %218 = tpu.matmul %216, %217, %cst_106 {dimension_numbers = #tpu.dot_dimension_numbers<[1], [0], [0], [1], [0, 0, 1, 1], [], []>} : vector<16x16xf32>, vector<16x32xf32>, vector<16x32xf32> -> vector<16x32xf32>
    %219 = arith.addf %199, %218 : vector<16x32xf32>
    %220 = arith.addf %143, %219 : vector<16x32xf32>
    %c1_107 = arith.constant 1 : index
    %c0_108 = arith.constant 0 : index
    %c0_109 = arith.constant 0 : index
    %221 = vector.load %arg10[%c1_107, %c0_108, %c0_109] : memref<2x1x32xf32, #tpu.memory_space<vmem>>, vector<1x1x32xf32>
    %222 = vector.shape_cast %221 : vector<1x1x32xf32> to vector<1x32xf32>
    %223 = vector.broadcast %222 : vector<1x32xf32> to vector<16x32xf32>
    %224 = arith.addf %220, %223 : vector<16x32xf32>
    %c1_110 = arith.constant 1 : index
    %c0_111 = arith.constant 0 : index
    %c0_112 = arith.constant 0 : index
    %225 = vector.load %arg11[%c1_110, %c0_111, %c0_112] : memref<2x1x32xf32, #tpu.memory_space<vmem>>, vector<1x1x32xf32>
    %226 = vector.shape_cast %225 : vector<1x1x32xf32> to vector<1x32xf32>
    %c1_113 = arith.constant 1 : index
    %c0_114 = arith.constant 0 : index
    %c0_115 = arith.constant 0 : index
    %227 = vector.load %arg12[%c1_113, %c0_114, %c0_115] : memref<2x1x32xf32, #tpu.memory_space<vmem>>, vector<1x1x32xf32>
    %228 = vector.shape_cast %227 : vector<1x1x32xf32> to vector<1x32xf32>
    %cst_116 = arith.constant dense<0.000000e+00> : vector<16xf32>
    %229 = vector.multi_reduction <add>, %224, %cst_116 [1] : vector<16x32xf32> to vector<16xf32>
    %230 = vector.shape_cast %229 : vector<16xf32> to vector<16x1xf32>
    %cst_117 = arith.constant 3.200000e+01 : f32
    %231 = vector.broadcast %cst_117 : f32 to vector<16x1xf32>
    %232 = arith.divf %230, %231 : vector<16x1xf32>
    %233 = vector.broadcast %232 : vector<16x1xf32> to vector<16x32xf32>
    %234 = arith.subf %224, %233 : vector<16x32xf32>
    %235 = arith.mulf %234, %234 : vector<16x32xf32>
    %cst_118 = arith.constant dense<0.000000e+00> : vector<16xf32>
    %236 = vector.multi_reduction <add>, %235, %cst_118 [1] : vector<16x32xf32> to vector<16xf32>
    %237 = vector.shape_cast %236 : vector<16xf32> to vector<16x1xf32>
    %cst_119 = arith.constant 3.200000e+01 : f32
    %238 = vector.broadcast %cst_119 : f32 to vector<16x1xf32>
    %239 = arith.divf %237, %238 : vector<16x1xf32>
    %240 = vector.broadcast %232 : vector<16x1xf32> to vector<16x32xf32>
    %241 = arith.subf %224, %240 : vector<16x32xf32>
    %cst_120 = arith.constant 9.99999997E-7 : f32
    %242 = vector.broadcast %cst_120 : f32 to vector<16x1xf32>
    %243 = arith.addf %239, %242 : vector<16x1xf32>
    %244 = math.rsqrt %243 : vector<16x1xf32>
    %245 = vector.broadcast %244 : vector<16x1xf32> to vector<16x32xf32>
    %246 = arith.mulf %241, %245 : vector<16x32xf32>
    %247 = vector.broadcast %226 : vector<1x32xf32> to vector<16x32xf32>
    %248 = arith.mulf %246, %247 : vector<16x32xf32>
    %249 = vector.broadcast %228 : vector<1x32xf32> to vector<16x32xf32>
    %250 = arith.addf %248, %249 : vector<16x32xf32>
    %c1_121 = arith.constant 1 : index
    %c0_122 = arith.constant 0 : index
    %c0_123 = arith.constant 0 : index
    %251 = vector.load %arg13[%c1_121, %c0_122, %c0_123] : memref<2x32x128xf32, #tpu.memory_space<vmem>>, vector<1x32x128xf32>
    %252 = vector.shape_cast %251 : vector<1x32x128xf32> to vector<32x128xf32>
    %cst_124 = arith.constant dense<0.000000e+00> : vector<16x128xf32>
    %253 = tpu.matmul %250, %252, %cst_124 {dimension_numbers = #tpu.dot_dimension_numbers<[1], [0], [0], [1], [0, 0, 1, 1], [], []>} : vector<16x32xf32>, vector<32x128xf32>, vector<16x128xf32> -> vector<16x128xf32>
    %c1_125 = arith.constant 1 : index
    %c0_126 = arith.constant 0 : index
    %c0_127 = arith.constant 0 : index
    %254 = vector.load %arg14[%c1_125, %c0_126, %c0_127] : memref<2x1x128xf32, #tpu.memory_space<vmem>>, vector<1x1x128xf32>
    %255 = vector.shape_cast %254 : vector<1x1x128xf32> to vector<1x128xf32>
    %256 = vector.broadcast %255 : vector<1x128xf32> to vector<16x128xf32>
    %257 = arith.addf %253, %256 : vector<16x128xf32>
    %cst_128 = arith.constant 5.000000e-01 : f32
    %258 = vector.broadcast %cst_128 : f32 to vector<16x128xf32>
    %259 = arith.mulf %258, %257 : vector<16x128xf32>
    %cst_129 = arith.constant 4.471500e-02 : f32
    %260 = vector.broadcast %cst_129 : f32 to vector<16x128xf32>
    %261 = arith.mulf %260, %257 : vector<16x128xf32>
    %262 = arith.mulf %261, %257 : vector<16x128xf32>
    %263 = arith.mulf %262, %257 : vector<16x128xf32>
    %264 = arith.addf %257, %263 : vector<16x128xf32>
    %cst_130 = arith.constant 0.797884583 : f32
    %265 = vector.broadcast %cst_130 : f32 to vector<16x128xf32>
    %266 = arith.mulf %265, %264 : vector<16x128xf32>
    %267 = math.tanh %266 : vector<16x128xf32>
    %cst_131 = arith.constant 1.000000e+00 : f32
    %268 = vector.broadcast %cst_131 : f32 to vector<16x128xf32>
    %269 = arith.addf %268, %267 : vector<16x128xf32>
    %270 = arith.mulf %259, %269 : vector<16x128xf32>
    %c1_132 = arith.constant 1 : index
    %c0_133 = arith.constant 0 : index
    %c0_134 = arith.constant 0 : index
    %271 = vector.load %arg15[%c1_132, %c0_133, %c0_134] : memref<2x128x32xf32, #tpu.memory_space<vmem>>, vector<1x128x32xf32>
    %272 = vector.shape_cast %271 : vector<1x128x32xf32> to vector<128x32xf32>
    %cst_135 = arith.constant dense<0.000000e+00> : vector<16x32xf32>
    %273 = tpu.matmul %270, %272, %cst_135 {dimension_numbers = #tpu.dot_dimension_numbers<[1], [0], [0], [1], [0, 0, 1, 1], [], []>} : vector<16x128xf32>, vector<128x32xf32>, vector<16x32xf32> -> vector<16x32xf32>
    %c1_136 = arith.constant 1 : index
    %c0_137 = arith.constant 0 : index
    %c0_138 = arith.constant 0 : index
    %274 = vector.load %arg16[%c1_136, %c0_137, %c0_138] : memref<2x1x32xf32, #tpu.memory_space<vmem>>, vector<1x1x32xf32>
    %275 = vector.shape_cast %274 : vector<1x1x32xf32> to vector<1x32xf32>
    %276 = vector.broadcast %275 : vector<1x32xf32> to vector<16x32xf32>
    %277 = arith.addf %273, %276 : vector<16x32xf32>
    %278 = arith.addf %224, %277 : vector<16x32xf32>
    %cst_139 = arith.constant dense<0.000000e+00> : vector<32xf32>
    %279 = vector.multi_reduction <add>, %278, %cst_139 [0] : vector<16x32xf32> to vector<32xf32>
    %280 = vector.shape_cast %279 : vector<32xf32> to vector<1x32xf32>
    %cst_140 = arith.constant 1.600000e+01 : f32
    %281 = vector.broadcast %cst_140 : f32 to vector<1x32xf32>
    %282 = arith.divf %280, %281 : vector<1x32xf32>
    %c0_141 = arith.constant 0 : index
    %c0_142 = arith.constant 0 : index
    %283 = vector.load %arg17[%c0_141, %c0_142] : memref<1x32xf32, #tpu.memory_space<vmem>>, vector<1x32xf32>
    %c0_143 = arith.constant 0 : index
    %c0_144 = arith.constant 0 : index
    %284 = vector.load %arg18[%c0_143, %c0_144] : memref<1x32xf32, #tpu.memory_space<vmem>>, vector<1x32xf32>
    %cst_145 = arith.constant dense<0.000000e+00> : vector<1xf32>
    %285 = vector.multi_reduction <add>, %282, %cst_145 [1] : vector<1x32xf32> to vector<1xf32>
    %286 = vector.shape_cast %285 : vector<1xf32> to vector<1x1xf32>
    %cst_146 = arith.constant 3.200000e+01 : f32
    %287 = vector.broadcast %cst_146 : f32 to vector<1x1xf32>
    %288 = arith.divf %286, %287 : vector<1x1xf32>
    %289 = vector.broadcast %288 : vector<1x1xf32> to vector<1x32xf32>
    %290 = arith.subf %282, %289 : vector<1x32xf32>
    %291 = arith.mulf %290, %290 : vector<1x32xf32>
    %cst_147 = arith.constant dense<0.000000e+00> : vector<1xf32>
    %292 = vector.multi_reduction <add>, %291, %cst_147 [1] : vector<1x32xf32> to vector<1xf32>
    %293 = vector.shape_cast %292 : vector<1xf32> to vector<1x1xf32>
    %cst_148 = arith.constant 3.200000e+01 : f32
    %294 = vector.broadcast %cst_148 : f32 to vector<1x1xf32>
    %295 = arith.divf %293, %294 : vector<1x1xf32>
    %296 = vector.broadcast %288 : vector<1x1xf32> to vector<1x32xf32>
    %297 = arith.subf %282, %296 : vector<1x32xf32>
    %cst_149 = arith.constant 9.99999997E-7 : f32
    %298 = vector.broadcast %cst_149 : f32 to vector<1x1xf32>
    %299 = arith.addf %295, %298 : vector<1x1xf32>
    %300 = math.rsqrt %299 : vector<1x1xf32>
    %301 = vector.broadcast %300 : vector<1x1xf32> to vector<1x32xf32>
    %302 = arith.mulf %297, %301 : vector<1x32xf32>
    %303 = arith.mulf %302, %283 : vector<1x32xf32>
    %304 = arith.addf %303, %284 : vector<1x32xf32>
    %c0_150 = arith.constant 0 : index
    %c0_151 = arith.constant 0 : index
    %c0_152 = arith.constant 0 : index
    %305 = vector.load %arg19[%c0_150, %c0_151, %c0_152] : memref<1x1x32xf32, #tpu.memory_space<vmem>>, vector<1x1x32xf32>
    %306 = vector.shape_cast %305 : vector<1x1x32xf32> to vector<1x32xf32>
    %307 = vector.shape_cast %304 : vector<1x32xf32> to vector<1x1x32xf32>
    tpu.vector_store %arg19[%c0_150, %c0_151, %c0_152], %307 {strides = array<i32>} : memref<1x1x32xf32, #tpu.memory_space<vmem>>, vector<1x1x32xf32>,
    return
  }
  func.func @transform_0(%arg0: i32) -> (i32, i32, i32) {
    %c0_i32 = arith.constant 0 : i32
    %c0_i32_0 = arith.constant 0 : i32
    %c0_i32_1 = arith.constant 0 : i32
    return %arg0, %c0_i32, %c0_i32_0 : i32, i32, i32
  }
  func.func @transform_1(%arg0: i32) -> (i32, i32) {
    %c0_i32 = arith.constant 0 : i32
    %c0_i32_0 = arith.constant 0 : i32
    %c0_i32_1 = arith.constant 0 : i32
    return %c0_i32, %c0_i32_0 : i32, i32
  }
  func.func @transform_2(%arg0: i32) -> (i32, i32) {
    %c0_i32 = arith.constant 0 : i32
    %c0_i32_0 = arith.constant 0 : i32
    %c0_i32_1 = arith.constant 0 : i32
    return %c0_i32, %c0_i32_0 : i32, i32
  }
  func.func @transform_3(%arg0: i32) -> (i32, i32) {
    %c0_i32 = arith.constant 0 : i32
    %c0_i32_0 = arith.constant 0 : i32
    %c0_i32_1 = arith.constant 0 : i32
    return %c0_i32, %c0_i32_0 : i32, i32
  }
  func.func @transform_4(%arg0: i32) -> (i32, i32, i32) {
    %c0_i32 = arith.constant 0 : i32
    %c0_i32_0 = arith.constant 0 : i32
    %c0_i32_1 = arith.constant 0 : i32
    %c0_i32_2 = arith.constant 0 : i32
    return %c0_i32, %c0_i32_0, %c0_i32_1 : i32, i32, i32
  }
  func.func @transform_5(%arg0: i32) -> (i32, i32, i32) {
    %c0_i32 = arith.constant 0 : i32
    %c0_i32_0 = arith.constant 0 : i32
    %c0_i32_1 = arith.constant 0 : i32
    %c0_i32_2 = arith.constant 0 : i32
    return %c0_i32, %c0_i32_0, %c0_i32_1 : i32, i32, i32
  }
  func.func @transform_6(%arg0: i32) -> (i32, i32, i32) {
    %c0_i32 = arith.constant 0 : i32
    %c0_i32_0 = arith.constant 0 : i32
    %c0_i32_1 = arith.constant 0 : i32
    %c0_i32_2 = arith.constant 0 : i32
    return %c0_i32, %c0_i32_0, %c0_i32_1 : i32, i32, i32
  }
  func.func @transform_7(%arg0: i32) -> (i32, i32, i32) {
    %c0_i32 = arith.constant 0 : i32
    %c0_i32_0 = arith.constant 0 : i32
    %c0_i32_1 = arith.constant 0 : i32
    %c0_i32_2 = arith.constant 0 : i32
    return %c0_i32, %c0_i32_0, %c0_i32_1 : i32, i32, i32
  }
  func.func @transform_8(%arg0: i32) -> (i32, i32, i32) {
    %c0_i32 = arith.constant 0 : i32
    %c0_i32_0 = arith.constant 0 : i32
    %c0_i32_1 = arith.constant 0 : i32
    %c0_i32_2 = arith.constant 0 : i32
    return %c0_i32, %c0_i32_0, %c0_i32_1 : i32, i32, i32
  }
  func.func @transform_9(%arg0: i32) -> (i32, i32, i32) {
    %c0_i32 = arith.constant 0 : i32
    %c0_i32_0 = arith.constant 0 : i32
    %c0_i32_1 = arith.constant 0 : i32
    %c0_i32_2 = arith.constant 0 : i32
    return %c0_i32, %c0_i32_0, %c0_i32_1 : i32, i32, i32
  }
  func.func @transform_10(%arg0: i32) -> (i32, i32, i32) {
    %c0_i32 = arith.constant 0 : i32
    %c0_i32_0 = arith.constant 0 : i32
    %c0_i32_1 = arith.constant 0 : i32
    %c0_i32_2 = arith.constant 0 : i32
    return %c0_i32, %c0_i32_0, %c0_i32_1 : i32, i32, i32
  }
  func.func @transform_11(%arg0: i32) -> (i32, i32, i32) {
    %c0_i32 = arith.constant 0 : i32
    %c0_i32_0 = arith.constant 0 : i32
    %c0_i32_1 = arith.constant 0 : i32
    %c0_i32_2 = arith.constant 0 : i32
    return %c0_i32, %c0_i32_0, %c0_i32_1 : i32, i32, i32
  }
  func.func @transform_12(%arg0: i32) -> (i32, i32, i32) {
    %c0_i32 = arith.constant 0 : i32
    %c0_i32_0 = arith.constant 0 : i32
    %c0_i32_1 = arith.constant 0 : i32
    %c0_i32_2 = arith.constant 0 : i32
    return %c0_i32, %c0_i32_0, %c0_i32_1 : i32, i32, i32
  }
  func.func @transform_13(%arg0: i32) -> (i32, i32, i32) {
    %c0_i32 = arith.constant 0 : i32
    %c0_i32_0 = arith.constant 0 : i32
    %c0_i32_1 = arith.constant 0 : i32
    %c0_i32_2 = arith.constant 0 : i32
    return %c0_i32, %c0_i32_0, %c0_i32_1 : i32, i32, i32
  }
  func.func @transform_14(%arg0: i32) -> (i32, i32, i32) {
    %c0_i32 = arith.constant 0 : i32
    %c0_i32_0 = arith.constant 0 : i32
    %c0_i32_1 = arith.constant 0 : i32
    %c0_i32_2 = arith.constant 0 : i32
    return %c0_i32, %c0_i32_0, %c0_i32_1 : i32, i32, i32
  }
  func.func @transform_15(%arg0: i32) -> (i32, i32, i32) {
    %c0_i32 = arith.constant 0 : i32
    %c0_i32_0 = arith.constant 0 : i32
    %c0_i32_1 = arith.constant 0 : i32
    %c0_i32_2 = arith.constant 0 : i32
    return %c0_i32, %c0_i32_0, %c0_i32_1 : i32, i32, i32
  }
  func.func @transform_16(%arg0: i32) -> (i32, i32) {
    %c0_i32 = arith.constant 0 : i32
    %c0_i32_0 = arith.constant 0 : i32
    %c0_i32_1 = arith.constant 0 : i32
    return %c0_i32, %c0_i32_0 : i32, i32
  }
  func.func @transform_17(%arg0: i32) -> (i32, i32) {
    %c0_i32 = arith.constant 0 : i32
    %c0_i32_0 = arith.constant 0 : i32
    %c0_i32_1 = arith.constant 0 : i32
    return %c0_i32, %c0_i32_0 : i32, i32
  }
  func.func @transform_18(%arg0: i32) -> (i32, i32, i32) {
    %c0_i32 = arith.constant 0 : i32
    %c0_i32_0 = arith.constant 0 : i32
    %c0_i32_1 = arith.constant 0 : i32
    return %arg0, %c0_i32, %c0_i32_0 : i32, i32, i32
  }
}

</mosaic_0001>

<llo_original>
// kernel: simvit_wrapper_forward.1
$region0: #{simvit_wrapper_forward.1}
  #allocation0 [shape = 'u32[]', space=smem, size = 0x4, offset = 0x4, fixed_abs, tag = 'smem constant byte address 0x4 - core index']
  #allocation1 [shape = 'u32[72,128]{1,0:T(1,128)}', space=vmem, size = 0x9000, scoped, tag = 'internal scratch']
  %s0 = inlined_call_operand.vmem [shape: f32[2,16,64], index: 0, kind: input, shape index: {}]
  %s1 = inlined_call_operand.vmem [shape: f32[16,32], index: 1, kind: input, shape index: {}]
  %s2 = inlined_call_operand.vmem [shape: f32[64,32], index: 2, kind: input, shape index: {}]
  %s3 = inlined_call_operand.vmem [shape: f32[1,32], index: 3, kind: input, shape index: {}]
  %s4 = inlined_call_operand.vmem [shape: f32[2,1,32], index: 4, kind: input, shape index: {}]
  %s5 = inlined_call_operand.vmem [shape: f32[2,1,32], index: 5, kind: input, shape index: {}]
  %s6 = inlined_call_operand.vmem [shape: f32[2,32,96], index: 6, kind: input, shape index: {}]
  %s7 = inlined_call_operand.vmem [shape: f32[2,1,96], index: 7, kind: input, shape index: {}]
  %s8 = inlined_call_operand.vmem [shape: f32[2,32,32], index: 8, kind: input, shape index: {}]
  %s9 = inlined_call_operand.vmem [shape: f32[2,1,32], index: 9, kind: input, shape index: {}]
  %s10 = inlined_call_operand.vmem [shape: f32[2,1,32], index: 10, kind: input, shape index: {}]
  %s11 = inlined_call_operand.vmem [shape: f32[2,1,32], index: 11, kind: input, shape index: {}]
  %s12 = inlined_call_operand.vmem [shape: f32[2,32,128], index: 12, kind: input, shape index: {}]
  %s13 = inlined_call_operand.vmem [shape: f32[2,1,128], index: 13, kind: input, shape index: {}]
  %s14 = inlined_call_operand.vmem [shape: f32[2,128,32], index: 14, kind: input, shape index: {}]
  %s15 = inlined_call_operand.vmem [shape: f32[2,1,32], index: 15, kind: input, shape index: {}]
  %s16 = inlined_call_operand.vmem [shape: f32[1,32], index: 16, kind: input, shape index: {}]
  %s17 = inlined_call_operand.vmem [shape: f32[1,32], index: 17, kind: input, shape index: {}]
  %s18 = inlined_call_operand.hbm [shape: f32[2,1,32], index: 18, kind: output, shape index: {}]
  %s19 = sld [smem:[#allocation0]]
  $region105: #{simvit_wrapper_forward.1} parent=0
    _
  %s21 = ssub.s32 1, %s19
  %s22 = scalar_select 0, %s21, %s19
  $region1: #{simvit_wrapper_forward.1} parent=0
    #allocation2 [shape = 'u8[1024]{0}', space=vmem, size = 0x400, scoped, tag = 'output window, operand 0']
    #allocation3 [shape = 's32[2]{0}', space=sflag, size = 0x8, scoped, tag = 'scoped memory for simvit_wrapper_forward.1']
    %23 = vsyncpa [#allocation3], 0
    %s24 = scalar_lea.sflag [#allocation3], 1
    %25 = vsyncpa %s24, 0
    loop: start=0, step=1, limit=4
    $region2: #{simvit_wrapper_forward.1} parent=1 // loop_pre_header
      _
    $region3: #{simvit_wrapper_forward.1} parent=1 // loop_header
      %s27 = sphi 0, %s31
      %p28 = scmp.ge.s32.totalorder %s27, 4
      %s37 = sphi 0, %s39
      %s40 = sphi 0, %s37
      %s41 = sphi 0, %s40
      %s57 = sphi 0, %s41
      %s61 = sphi 0, %s61
      %s63 = sphi 0, %s61
      %s64 = sphi 0, %s63
      %s78 = sphi 0, %s64
      %s82 = sphi 0, %s82
      %s84 = sphi 0, %s82
      %s85 = sphi 0, %s84
      %s99 = sphi 0, %s85
      %s103 = sphi 0, %s103
      %s105 = sphi 0, %s103
      %s106 = sphi 0, %s105
      %s120 = sphi 0, %s106
      %s124 = sphi 0, %s124
      %s126 = sphi 0, %s124
      %s127 = sphi 0, %s126
      %s141 = sphi 0, %s127
      %s145 = sphi 0, %s145
      %s147 = sphi 0, %s145
      %s148 = sphi 0, %s147
      %s162 = sphi 0, %s148
      %s166 = sphi 0, %s166
      %s168 = sphi 0, %s166
      %s169 = sphi 0, %s168
      %s183 = sphi 0, %s169
      %s187 = sphi 0, %s187
      %s189 = sphi 0, %s187
      %s190 = sphi 0, %s189
      %s204 = sphi 0, %s190
      %s208 = sphi 0, %s208
      %s210 = sphi 0, %s208
      %s211 = sphi 0, %s210
      %s225 = sphi 0, %s211
      %s229 = sphi 0, %s229
      %s231 = sphi 0, %s229
      %s232 = sphi 0, %s231
      %s246 = sphi 0, %s232
      %s250 = sphi 0, %s250
      %s252 = sphi 0, %s250
      %s253 = sphi 0, %s252
      %s267 = sphi 0, %s253
      %s271 = sphi 0, %s271
      %s273 = sphi 0, %s271
      %s274 = sphi 0, %s273
      %s288 = sphi 0, %s274
      %s292 = sphi 0, %s292
      %s294 = sphi 0, %s292
      %s295 = sphi 0, %s294
      %s309 = sphi 0, %s295
      %s313 = sphi 0, %s313
      %s315 = sphi 0, %s313
      %s316 = sphi 0, %s315
      %s330 = sphi 0, %s316
      %s334 = sphi 0, %s334
      %s336 = sphi 0, %s334
      %s337 = sphi 0, %s336
      %s351 = sphi 0, %s337
      %s355 = sphi 0, %s355
      %s357 = sphi 0, %s355
      %s358 = sphi 0, %s357
      %s372 = sphi 0, %s358
      %s376 = sphi 0, %s376
      %s378 = sphi 0, %s376
      %s379 = sphi 0, %s378
      %s393 = sphi 0, %s379
      %s397 = sphi 0, %s397
      %s399 = sphi 0, %s397
      %s400 = sphi 0, %s399
      %s414 = sphi 0, %s400
      %s420 = sphi 0, %s422
      %s423 = sphi 0, %s420
      %s424 = sphi 0, %s423
      %s440 = sphi 0, %s424
    $region4: #{simvit_wrapper_forward.1} parent=1 // loop_header_branch
      %30 = sbr.rel (%p28) target = $region8
    $region5: #{simvit_wrapper_forward.1} parent=1 // loop_body
      %s32 = ssub.s32 %s27, 1
      %s33 = ssub.s32 %s27, 2
      %s34 = sadd.s32 %s27, 1
      %s35 = ssub.s32 %s27, %s34
      %p36 = scmp.eq.s32.totalorder %s35, 0
      %s38 = sadd.s32 %s37, 1
      %s39 = scalar_select %p36, %s37, %s38
      %p42 = pneg %p36
      %p43 = scmp.eq.s32.totalorder %s27, 1
      %p44 = por %p42, %p43
      %p45 = scmp.ne.s32.totalorder %s37, %s40
      %p46 = scmp.eq.s32.totalorder %s27, 0
      %p47 = por %p45, %p46
      %p48 = scmp.ne.s32.totalorder %s37, %s40
      %p49 = scmp.eq.s32.totalorder %s32, 1
      %p50 = por %p48, %p49
      %p51 = scmp.ne.s32.totalorder %s40, %s41
      %p52 = scmp.eq.s32.totalorder %s32, 0
      %p53 = por %p51, %p52
      %p54 = scmp.ne.s32.totalorder %s40, %s41
      %p55 = scmp.eq.s32.totalorder %s33, 1
      %p56 = por %p54, %p55
      %p58 = scmp.ne.s32.totalorder %s41, %s57
      %p59 = scmp.eq.s32.totalorder %s33, 0
      %p60 = por %p58, %p59
      %s62 = sadd.s32 %s61, 1
      %p65 = scmp.eq.s32.totalorder %s27, 1
      %p66 = scmp.ne.s32.totalorder %s61, %s63
      %p67 = scmp.eq.s32.totalorder %s27, 0
      %p68 = por %p66, %p67
      %p69 = scmp.ne.s32.totalorder %s61, %s63
      %p70 = scmp.eq.s32.totalorder %s32, 1
      %p71 = por %p69, %p70
      %p72 = scmp.ne.s32.totalorder %s63, %s64
      %p73 = scmp.eq.s32.totalorder %s32, 0
      %p74 = por %p72, %p73
      %p75 = scmp.ne.s32.totalorder %s63, %s64
      %p76 = scmp.eq.s32.totalorder %s33, 1
      %p77 = por %p75, %p76
      %p79 = scmp.ne.s32.totalorder %s64, %s78
      %p80 = scmp.eq.s32.totalorder %s33, 0
      %p81 = por %p79, %p80
      %s83 = sadd.s32 %s82, 1
      %p86 = scmp.eq.s32.totalorder %s27, 1
      %p87 = scmp.ne.s32.totalorder %s82, %s84
      %p88 = scmp.eq.s32.totalorder %s27, 0
      %p89 = por %p87, %p88
      %p90 = scmp.ne.s32.totalorder %s82, %s84
      %p91 = scmp.eq.s32.totalorder %s32, 1
      %p92 = por %p90, %p91
      %p93 = scmp.ne.s32.totalorder %s84, %s85
      %p94 = scmp.eq.s32.totalorder %s32, 0
      %p95 = por %p93, %p94
      %p96 = scmp.ne.s32.totalorder %s84, %s85
      %p97 = scmp.eq.s32.totalorder %s33, 1
      %p98 = por %p96, %p97
      %p100 = scmp.ne.s32.totalorder %s85, %s99
      %p101 = scmp.eq.s32.totalorder %s33, 0
      %p102 = por %p100, %p101
      %s104 = sadd.s32 %s103, 1
      %p107 = scmp.eq.s32.totalorder %s27, 1
      %p108 = scmp.ne.s32.totalorder %s103, %s105
      %p109 = scmp.eq.s32.totalorder %s27, 0
      %p110 = por %p108, %p109
      %p111 = scmp.ne.s32.totalorder %s103, %s105
      %p112 = scmp.eq.s32.totalorder %s32, 1
      %p113 = por %p111, %p112
      %p114 = scmp.ne.s32.totalorder %s105, %s106
      %p115 = scmp.eq.s32.totalorder %s32, 0
      %p116 = por %p114, %p115
      %p117 = scmp.ne.s32.totalorder %s105, %s106
      %p118 = scmp.eq.s32.totalorder %s33, 1
      %p119 = por %p117, %p118
      %p121 = scmp.ne.s32.totalorder %s106, %s120
      %p122 = scmp.eq.s32.totalorder %s33, 0
      %p123 = por %p121, %p122
      %s125 = sadd.s32 %s124, 1
      %p128 = scmp.eq.s32.totalorder %s27, 1
      %p129 = scmp.ne.s32.totalorder %s124, %s126
      %p130 = scmp.eq.s32.totalorder %s27, 0
      %p131 = por %p129, %p130
      %p132 = scmp.ne.s32.totalorder %s124, %s126
      %p133 = scmp.eq.s32.totalorder %s32, 1
      %p134 = por %p132, %p133
      %p135 = scmp.ne.s32.totalorder %s126, %s127
      %p136 = scmp.eq.s32.totalorder %s32, 0
      %p137 = por %p135, %p136
      %p138 = scmp.ne.s32.totalorder %s126, %s127
      %p139 = scmp.eq.s32.totalorder %s33, 1
      %p140 = por %p138, %p139
      %p142 = scmp.ne.s32.totalorder %s127, %s141
      %p143 = scmp.eq.s32.totalorder %s33, 0
      %p144 = por %p142, %p143
      %s146 = sadd.s32 %s145, 1
      %p149 = scmp.eq.s32.totalorder %s27, 1
      %p150 = scmp.ne.s32.totalorder %s145, %s147
      %p151 = scmp.eq.s32.totalorder %s27, 0
      %p152 = por %p150, %p151
      %p153 = scmp.ne.s32.totalorder %s145, %s147
      %p154 = scmp.eq.s32.totalorder %s32, 1
      %p155 = por %p153, %p154
      %p156 = scmp.ne.s32.totalorder %s147, %s148
      %p157 = scmp.eq.s32.totalorder %s32, 0
      %p158 = por %p156, %p157
      %p159 = scmp.ne.s32.totalorder %s147, %s148
      %p160 = scmp.eq.s32.totalorder %s33, 1
      %p161 = por %p159, %p160
      %p163 = scmp.ne.s32.totalorder %s148, %s162
      %p164 = scmp.eq.s32.totalorder %s33, 0
      %p165 = por %p163, %p164
      %s167 = sadd.s32 %s166, 1
      %p170 = scmp.eq.s32.totalorder %s27, 1
      %p171 = scmp.ne.s32.totalorder %s166, %s168
      %p172 = scmp.eq.s32.totalorder %s27, 0
      %p173 = por %p171, %p172
      %p174 = scmp.ne.s32.totalorder %s166, %s168
      %p175 = scmp.eq.s32.totalorder %s32, 1
      %p176 = por %p174, %p175
      %p177 = scmp.ne.s32.totalorder %s168, %s169
      %p178 = scmp.eq.s32.totalorder %s32, 0
      %p179 = por %p177, %p178
      %p180 = scmp.ne.s32.totalorder %s168, %s169
      %p181 = scmp.eq.s32.totalorder %s33, 1
      %p182 = por %p180, %p181
      %p184 = scmp.ne.s32.totalorder %s169, %s183
      %p185 = scmp.eq.s32.totalorder %s33, 0
      %p186 = por %p184, %p185
      %s188 = sadd.s32 %s187, 1
      %p191 = scmp.eq.s32.totalorder %s27, 1
      %p192 = scmp.ne.s32.totalorder %s187, %s189
      %p193 = scmp.eq.s32.totalorder %s27, 0
      %p194 = por %p192, %p193
      %p195 = scmp.ne.s32.totalorder %s187, %s189
      %p196 = scmp.eq.s32.totalorder %s32, 1
      %p197 = por %p195, %p196
      %p198 = scmp.ne.s32.totalorder %s189, %s190
      %p199 = scmp.eq.s32.totalorder %s32, 0
      %p200 = por %p198, %p199
      %p201 = scmp.ne.s32.totalorder %s189, %s190
      %p202 = scmp.eq.s32.totalorder %s33, 1
      %p203 = por %p201, %p202
      %p205 = scmp.ne.s32.totalorder %s190, %s204
      %p206 = scmp.eq.s32.totalorder %s33, 0
      %p207 = por %p205, %p206
      %s209 = sadd.s32 %s208, 1
      %p212 = scmp.eq.s32.totalorder %s27, 1
      %p213 = scmp.ne.s32.totalorder %s208, %s210
      %p214 = scmp.eq.s32.totalorder %s27, 0
      %p215 = por %p213, %p214
      %p216 = scmp.ne.s32.totalorder %s208, %s210
      %p217 = scmp.eq.s32.totalorder %s32, 1
      %p218 = por %p216, %p217
      %p219 = scmp.ne.s32.totalorder %s210, %s211
      %p220 = scmp.eq.s32.totalorder %s32, 0
      %p221 = por %p219, %p220
      %p222 = scmp.ne.s32.totalorder %s210, %s211
      %p223 = scmp.eq.s32.totalorder %s33, 1
      %p224 = por %p222, %p223
      %p226 = scmp.ne.s32.totalorder %s211, %s225
      %p227 = scmp.eq.s32.totalorder %s33, 0
      %p228 = por %p226, %p227
      %s230 = sadd.s32 %s229, 1
      %p233 = scmp.eq.s32.totalorder %s27, 1
      %p234 = scmp.ne.s32.totalorder %s229, %s231
      %p235 = scmp.eq.s32.totalorder %s27, 0
      %p236 = por %p234, %p235
      %p237 = scmp.ne.s32.totalorder %s229, %s231
      %p238 = scmp.eq.s32.totalorder %s32, 1
      %p239 = por %p237, %p238
      %p240 = scmp.ne.s32.totalorder %s231, %s232
      %p241 = scmp.eq.s32.totalorder %s32, 0
      %p242 = por %p240, %p241
      %p243 = scmp.ne.s32.totalorder %s231, %s232
      %p244 = scmp.eq.s32.totalorder %s33, 1
      %p245 = por %p243, %p244
      %p247 = scmp.ne.s32.totalorder %s232, %s246
      %p248 = scmp.eq.s32.totalorder %s33, 0
      %p249 = por %p247, %p248
      %s251 = sadd.s32 %s250, 1
      %p254 = scmp.eq.s32.totalorder %s27, 1
      %p255 = scmp.ne.s32.totalorder %s250, %s252
      %p256 = scmp.eq.s32.totalorder %s27, 0
      %p257 = por %p255, %p256
      %p258 = scmp.ne.s32.totalorder %s250, %s252
      %p259 = scmp.eq.s32.totalorder %s32, 1
      %p260 = por %p258, %p259
      %p261 = scmp.ne.s32.totalorder %s252, %s253
      %p262 = scmp.eq.s32.totalorder %s32, 0
      %p263 = por %p261, %p262
      %p264 = scmp.ne.s32.totalorder %s252, %s253
      %p265 = scmp.eq.s32.totalorder %s33, 1
      %p266 = por %p264, %p265
      %p268 = scmp.ne.s32.totalorder %s253, %s267
      %p269 = scmp.eq.s32.totalorder %s33, 0
      %p270 = por %p268, %p269
      %s272 = sadd.s32 %s271, 1
      %p275 = scmp.eq.s32.totalorder %s27, 1
      %p276 = scmp.ne.s32.totalorder %s271, %s273
      %p277 = scmp.eq.s32.totalorder %s27, 0
      %p278 = por %p276, %p277
      %p279 = scmp.ne.s32.totalorder %s271, %s273
      %p280 = scmp.eq.s32.totalorder %s32, 1
      %p281 = por %p279, %p280
      %p282 = scmp.ne.s32.totalorder %s273, %s274
      %p283 = scmp.eq.s32.totalorder %s32, 0
      %p284 = por %p282, %p283
      %p285 = scmp.ne.s32.totalorder %s273, %s274
      %p286 = scmp.eq.s32.totalorder %s33, 1
      %p287 = por %p285, %p286
      %p289 = scmp.ne.s32.totalorder %s274, %s288
      %p290 = scmp.eq.s32.totalorder %s33, 0
      %p291 = por %p289, %p290
      %s293 = sadd.s32 %s292, 1
      %p296 = scmp.eq.s32.totalorder %s27, 1
      %p297 = scmp.ne.s32.totalorder %s292, %s294
      %p298 = scmp.eq.s32.totalorder %s27, 0
      %p299 = por %p297, %p298
      %p300 = scmp.ne.s32.totalorder %s292, %s294
      %p301 = scmp.eq.s32.totalorder %s32, 1
      %p302 = por %p300, %p301
      %p303 = scmp.ne.s32.totalorder %s294, %s295
      %p304 = scmp.eq.s32.totalorder %s32, 0
      %p305 = por %p303, %p304
      %p306 = scmp.ne.s32.totalorder %s294, %s295
      %p307 = scmp.eq.s32.totalorder %s33, 1
      %p308 = por %p306, %p307
      %p310 = scmp.ne.s32.totalorder %s295, %s309
      %p311 = scmp.eq.s32.totalorder %s33, 0
      %p312 = por %p310, %p311
      %s314 = sadd.s32 %s313, 1
      %p317 = scmp.eq.s32.totalorder %s27, 1
      %p318 = scmp.ne.s32.totalorder %s313, %s315
      %p319 = scmp.eq.s32.totalorder %s27, 0
      %p320 = por %p318, %p319
      %p321 = scmp.ne.s32.totalorder %s313, %s315
      %p322 = scmp.eq.s32.totalorder %s32, 1
      %p323 = por %p321, %p322
      %p324 = scmp.ne.s32.totalorder %s315, %s316
      %p325 = scmp.eq.s32.totalorder %s32, 0
      %p326 = por %p324, %p325
      %p327 = scmp.ne.s32.totalorder %s315, %s316
      %p328 = scmp.eq.s32.totalorder %s33, 1
      %p329 = por %p327, %p328
      %p331 = scmp.ne.s32.totalorder %s316, %s330
      %p332 = scmp.eq.s32.totalorder %s33, 0
      %p333 = por %p331, %p332
      %s335 = sadd.s32 %s334, 1
      %p338 = scmp.eq.s32.totalorder %s27, 1
      %p339 = scmp.ne.s32.totalorder %s334, %s336
      %p340 = scmp.eq.s32.totalorder %s27, 0
      %p341 = por %p339, %p340
      %p342 = scmp.ne.s32.totalorder %s334, %s336
      %p343 = scmp.eq.s32.totalorder %s32, 1
      %p344 = por %p342, %p343
      %p345 = scmp.ne.s32.totalorder %s336, %s337
      %p346 = scmp.eq.s32.totalorder %s32, 0
      %p347 = por %p345, %p346
      %p348 = scmp.ne.s32.totalorder %s336, %s337
      %p349 = scmp.eq.s32.totalorder %s33, 1
      %p350 = por %p348, %p349
      %p352 = scmp.ne.s32.totalorder %s337, %s351
      %p353 = scmp.eq.s32.totalorder %s33, 0
      %p354 = por %p352, %p353
      %s356 = sadd.s32 %s355, 1
      %p359 = scmp.eq.s32.totalorder %s27, 1
      %p360 = scmp.ne.s32.totalorder %s355, %s357
      %p361 = scmp.eq.s32.totalorder %s27, 0
      %p362 = por %p360, %p361
      %p363 = scmp.ne.s32.totalorder %s355, %s357
      %p364 = scmp.eq.s32.totalorder %s32, 1
      %p365 = por %p363, %p364
      %p366 = scmp.ne.s32.totalorder %s357, %s358
      %p367 = scmp.eq.s32.totalorder %s32, 0
      %p368 = por %p366, %p367
      %p369 = scmp.ne.s32.totalorder %s357, %s358
      %p370 = scmp.eq.s32.totalorder %s33, 1
      %p371 = por %p369, %p370
      %p373 = scmp.ne.s32.totalorder %s358, %s372
      %p374 = scmp.eq.s32.totalorder %s33, 0
      %p375 = por %p373, %p374
      %s377 = sadd.s32 %s376, 1
      %p380 = scmp.eq.s32.totalorder %s27, 1
      %p381 = scmp.ne.s32.totalorder %s376, %s378
      %p382 = scmp.eq.s32.totalorder %s27, 0
      %p383 = por %p381, %p382
      %p384 = scmp.ne.s32.totalorder %s376, %s378
      %p385 = scmp.eq.s32.totalorder %s32, 1
      %p386 = por %p384, %p385
      %p387 = scmp.ne.s32.totalorder %s378, %s379
      %p388 = scmp.eq.s32.totalorder %s32, 0
      %p389 = por %p387, %p388
      %p390 = scmp.ne.s32.totalorder %s378, %s379
      %p391 = scmp.eq.s32.totalorder %s33, 1
      %p392 = por %p390, %p391
      %p394 = scmp.ne.s32.totalorder %s379, %s393
      %p395 = scmp.eq.s32.totalorder %s33, 0
      %p396 = por %p394, %p395
      %s398 = sadd.s32 %s397, 1
      %p401 = scmp.eq.s32.totalorder %s27, 1
      %p402 = scmp.ne.s32.totalorder %s397, %s399
      %p403 = scmp.eq.s32.totalorder %s27, 0
      %p404 = por %p402, %p403
      %p405 = scmp.ne.s32.totalorder %s397, %s399
      %p406 = scmp.eq.s32.totalorder %s32, 1
      %p407 = por %p405, %p406
      %p408 = scmp.ne.s32.totalorder %s399, %s400
      %p409 = scmp.eq.s32.totalorder %s32, 0
      %p410 = por %p408, %p409
      %p411 = scmp.ne.s32.totalorder %s399, %s400
      %p412 = scmp.eq.s32.totalorder %s33, 1
      %p413 = por %p411, %p412
      %p415 = scmp.ne.s32.totalorder %s400, %s414
      %p416 = scmp.eq.s32.totalorder %s33, 0
      %p417 = por %p415, %p416
      %s418 = ssub.s32 %s27, %s34
      %p419 = scmp.eq.s32.totalorder %s418, 0
      %s421 = sadd.s32 %s420, 1
      %s422 = scalar_select %p419, %s420, %s421
      %p425 = pneg %p419
      %p426 = scmp.eq.s32.totalorder %s27, 1
      %p427 = por %p425, %p426
      %p428 = scmp.ne.s32.totalorder %s420, %s423
      %p429 = scmp.eq.s32.totalorder %s27, 0
      %p430 = por %p428, %p429
      %p431 = scmp.ne.s32.totalorder %s420, %s423
      %p432 = scmp.eq.s32.totalorder %s32, 1
      %p433 = por %p431, %p432
      %p434 = scmp.ne.s32.totalorder %s423, %s424
      %p435 = scmp.eq.s32.totalorder %s32, 0
      %p436 = por %p434, %p435
      %p437 = scmp.ne.s32.totalorder %s423, %s424
      %p438 = scmp.eq.s32.totalorder %s33, 1
      %p439 = por %p437, %p438
      %p441 = scmp.ne.s32.totalorder %s424, %s440
      %p442 = scmp.eq.s32.totalorder %s33, 0
      %p443 = por %p441, %p442
      %p444 = scmp.le.s32.totalorder 1, %s27
      %p445 = scmp.lt.s32.totalorder %s27, 3
      %p446 = pnand %p444, %p445
      %p447 = pneg %p446
      // Predicated region
      $region9: #{simvit_wrapper_forward.1} parent=5 // pred_check
        _
      $region10: #{simvit_wrapper_forward.1} parent=5 // pred_check_branch
        %449 = sbr.rel (%p446) target = $region12
      $region11: #{simvit_wrapper_forward.1} parent=5 // pred_region
        %s450 = ssub.s32 %s27, 1
        // Predicated region
        $region13: #{simvit_wrapper_forward.1} parent=11 // pred_check
          %p451 = pneg %p74
        $region14: #{simvit_wrapper_forward.1} parent=11 // pred_check_branch
          %453 = sbr.rel (%p451) target = $region16
        $region15: #{simvit_wrapper_forward.1} parent=11 // pred_region
          _
        $region16: #{simvit_wrapper_forward.1} parent=11 // pred_fallthru
          _
        // Predicated region
        $region17: #{simvit_wrapper_forward.1} parent=11 // pred_check
          %p454 = pneg %p95
        $region18: #{simvit_wrapper_forward.1} parent=11 // pred_check_branch
          %456 = sbr.rel (%p454) target = $region20
        $region19: #{simvit_wrapper_forward.1} parent=11 // pred_region
          _
        $region20: #{simvit_wrapper_forward.1} parent=11 // pred_fallthru
          _
        // Predicated region
        $region21: #{simvit_wrapper_forward.1} parent=11 // pred_check
          %p457 = pneg %p116
        $region22: #{simvit_wrapper_forward.1} parent=11 // pred_check_branch
          %459 = sbr.rel (%p457) target = $region24
        $region23: #{simvit_wrapper_forward.1} parent=11 // pred_region
          _
        $region24: #{simvit_wrapper_forward.1} parent=11 // pred_fallthru
          _
        // Predicated region
        $region25: #{simvit_wrapper_forward.1} parent=11 // pred_check
          %p460 = pneg %p137
        $region26: #{simvit_wrapper_forward.1} parent=11 // pred_check_branch
          %462 = sbr.rel (%p460) target = $region28
        $region27: #{simvit_wrapper_forward.1} parent=11 // pred_region
          _
        $region28: #{simvit_wrapper_forward.1} parent=11 // pred_fallthru
          _
        // Predicated region
        $region29: #{simvit_wrapper_forward.1} parent=11 // pred_check
          %p463 = pneg %p158
        $region30: #{simvit_wrapper_forward.1} parent=11 // pred_check_branch
          %465 = sbr.rel (%p463) target = $region32
        $region31: #{simvit_wrapper_forward.1} parent=11 // pred_region
          _
        $region32: #{simvit_wrapper_forward.1} parent=11 // pred_fallthru
          _
        // Predicated region
        $region33: #{simvit_wrapper_forward.1} parent=11 // pred_check
          %p466 = pneg %p179
        $region34: #{simvit_wrapper_forward.1} parent=11 // pred_check_branch
          %468 = sbr.rel (%p466) target = $region36
        $region35: #{simvit_wrapper_forward.1} parent=11 // pred_region
          _
        $region36: #{simvit_wrapper_forward.1} parent=11 // pred_fallthru
          _
        // Predicated region
        $region37: #{simvit_wrapper_forward.1} parent=11 // pred_check
          %p469 = pneg %p200
        $region38: #{simvit_wrapper_forward.1} parent=11 // pred_check_branch
          %471 = sbr.rel (%p469) target = $region40
        $region39: #{simvit_wrapper_forward.1} parent=11 // pred_region
          _
        $region40: #{simvit_wrapper_forward.1} parent=11 // pred_fallthru
          _
        // Predicated region
        $region41: #{simvit_wrapper_forward.1} parent=11 // pred_check
          %p472 = pneg %p221
        $region42: #{simvit_wrapper_forward.1} parent=11 // pred_check_branch
          %474 = sbr.rel (%p472) target = $region44
        $region43: #{simvit_wrapper_forward.1} parent=11 // pred_region
          _
        $region44: #{simvit_wrapper_forward.1} parent=11 // pred_fallthru
          _
        // Predicated region
        $region45: #{simvit_wrapper_forward.1} parent=11 // pred_check
          %p475 = pneg %p242
        $region46: #{simvit_wrapper_forward.1} parent=11 // pred_check_branch
          %477 = sbr.rel (%p475) target = $region48
        $region47: #{simvit_wrapper_forward.1} parent=11 // pred_region
          _
        $region48: #{simvit_wrapper_forward.1} parent=11 // pred_fallthru
          _
        // Predicated region
        $region49: #{simvit_wrapper_forward.1} parent=11 // pred_check
          %p478 = pneg %p263
        $region50: #{simvit_wrapper_forward.1} parent=11 // pred_check_branch
          %480 = sbr.rel (%p478) target = $region52
        $region51: #{simvit_wrapper_forward.1} parent=11 // pred_region
          _
        $region52: #{simvit_wrapper_forward.1} parent=11 // pred_fallthru
          _
        // Predicated region
        $region53: #{simvit_wrapper_forward.1} parent=11 // pred_check
          %p481 = pneg %p284
        $region54: #{simvit_wrapper_forward.1} parent=11 // pred_check_branch
          %483 = sbr.rel (%p481) target = $region56
        $region55: #{simvit_wrapper_forward.1} parent=11 // pred_region
          _
        $region56: #{simvit_wrapper_forward.1} parent=11 // pred_fallthru
          _
        // Predicated region
        $region57: #{simvit_wrapper_forward.1} parent=11 // pred_check
          %p484 = pneg %p305
        $region58: #{simvit_wrapper_forward.1} parent=11 // pred_check_branch
          %486 = sbr.rel (%p484) target = $region60
        $region59: #{simvit_wrapper_forward.1} parent=11 // pred_region
          _
        $region60: #{simvit_wrapper_forward.1} parent=11 // pred_fallthru
          _
        // Predicated region
        $region61: #{simvit_wrapper_forward.1} parent=11 // pred_check
          %p487 = pneg %p326
        $region62: #{simvit_wrapper_forward.1} parent=11 // pred_check_branch
          %489 = sbr.rel (%p487) target = $region64
        $region63: #{simvit_wrapper_forward.1} parent=11 // pred_region
          _
        $region64: #{simvit_wrapper_forward.1} parent=11 // pred_fallthru
          _
        // Predicated region
        $region65: #{simvit_wrapper_forward.1} parent=11 // pred_check
          %p490 = pneg %p347
        $region66: #{simvit_wrapper_forward.1} parent=11 // pred_check_branch
          %492 = sbr.rel (%p490) target = $region68
        $region67: #{simvit_wrapper_forward.1} parent=11 // pred_region
          _
        $region68: #{simvit_wrapper_forward.1} parent=11 // pred_fallthru
          _
        // Predicated region
        $region69: #{simvit_wrapper_forward.1} parent=11 // pred_check
          %p493 = pneg %p368
        $region70: #{simvit_wrapper_forward.1} parent=11 // pred_check_branch
          %495 = sbr.rel (%p493) target = $region72
        $region71: #{simvit_wrapper_forward.1} parent=11 // pred_region
          _
        $region72: #{simvit_wrapper_forward.1} parent=11 // pred_fallthru
          _
        // Predicated region
        $region73: #{simvit_wrapper_forward.1} parent=11 // pred_check
          %p496 = pneg %p389
        $region74: #{simvit_wrapper_forward.1} parent=11 // pred_check_branch
          %498 = sbr.rel (%p496) target = $region76
        $region75: #{simvit_wrapper_forward.1} parent=11 // pred_region
          _
        $region76: #{simvit_wrapper_forward.1} parent=11 // pred_fallthru
          _
        // Predicated region
        $region77: #{simvit_wrapper_forward.1} parent=11 // pred_check
          %p499 = pneg %p410
        $region78: #{simvit_wrapper_forward.1} parent=11 // pred_check_branch
          %501 = sbr.rel (%p499) target = $region80
        $region79: #{simvit_wrapper_forward.1} parent=11 // pred_region
          _
        $region80: #{simvit_wrapper_forward.1} parent=11 // pred_fallthru
          _
      $region12: #{simvit_wrapper_forward.1} parent=5 // pred_fallthru
        _
      %p502 = scmp.lt.s32.totalorder %s27, 2
      // Predicated region
      $region81: #{simvit_wrapper_forward.1} parent=5 // pred_check
        %p503 = pneg %p502
      $region82: #{simvit_wrapper_forward.1} parent=5 // pred_check_branch
        %505 = sbr.rel (%p503) target = $region84
      $region83: #{simvit_wrapper_forward.1} parent=5 // pred_region
        // Predicated region
        $region85: #{simvit_wrapper_forward.1} parent=83 // pred_check
          %p506 = pneg %p47
        $region86: #{simvit_wrapper_forward.1} parent=83 // pred_check_branch
          %508 = sbr.rel (%p506) target = $region88
        $region87: #{simvit_wrapper_forward.1} parent=83 // pred_region
          %p509 = scmp.lt.s32.totalorder %s27, 1
          %s510 = scalar_select %p509, %s27, 1
          %s511 = smul.addr %s510, 2
          %s512 = smul.addr %s511, 8
          %s513 = scalar_lea.vmem %s0, %s512
        $region88: #{simvit_wrapper_forward.1} parent=83 // pred_fallthru
          _
      $region84: #{simvit_wrapper_forward.1} parent=5 // pred_fallthru
        _
      %p514 = scmp.le.s32.totalorder 1, %s27
      %p515 = scmp.lt.s32.totalorder %s27, 3
      %p516 = pnand %p514, %p515
      %p517 = pneg %p516
      // Predicated region
      $region89: #{simvit_wrapper_forward.1} parent=5 // pred_check
        _
      $region90: #{simvit_wrapper_forward.1} parent=5 // pred_check_branch
        %519 = sbr.rel (%p516) target = $region92
      $region91: #{simvit_wrapper_forward.1} parent=5 // pred_region
        %s520 = ssub.s32 %s27, 1
        %p521 = scmp.lt.s32.totalorder %s32, 1
        %s522 = scalar_select %p521, %s32, 1
        %s523 = smul.addr %s522, 2
        %s524 = smul.addr %s523, 8
        %s525 = scalar_lea.vmem %s0, %s524
        %p526 = pneg %p53
        %p527 = pneg %p50
        %p528 = pneg %p74
        %p529 = pneg %p71
        %p530 = pneg %p95
        %p531 = pneg %p92
        %p532 = pneg %p116
        %p533 = pneg %p113
        %p534 = pneg %p137
        %p535 = pneg %p134
        %p536 = pneg %p158
        %p537 = pneg %p155
        %p538 = pneg %p179
        %p539 = pneg %p176
        %p540 = pneg %p200
        %p541 = pneg %p197
        %p542 = pneg %p221
        %p543 = pneg %p218
        %p544 = pneg %p242
        %p545 = pneg %p239
        %p546 = pneg %p263
        %p547 = pneg %p260
        %p548 = pneg %p284
        %p549 = pneg %p281
        %p550 = pneg %p305
        %p551 = pneg %p302
        %p552 = pneg %p326
        %p553 = pneg %p323
        %p554 = pneg %p347
        %p555 = pneg %p344
        %p556 = pneg %p368
        %p557 = pneg %p365
        %p558 = pneg %p389
        %p559 = pneg %p386
        %p560 = pneg %p410
        %p561 = pneg %p407
        %p562 = pneg %p436
        %p563 = pneg %p433
        %s564 = sand.u32 %s423, 1
        %s565 = scalar_lea.sflag [#allocation3], %s564
        %s566 = sand.u32 %s423, 1
        %s567 = scalar_lea.vmem [#allocation2], %s566
        %p568 = scmp.lt.s32.totalorder %s32, 1
        %s569 = scalar_select %p568, %s32, 1
        %s570 = smul.addr %s569, 2
        %s571 = smul.addr %s570, 8
        %s572 = scalar_lea.vmem %s0, %s571
        %v573 = vld [vmem:[%s572] sm:$0xff]
        %v574 = vld [vmem:[%s572 + $0x8] sm:$0xff]
        %v575 = vld [vmem:[%s2] sm:$0xff]
        %v576 = vld [vmem:[%s2 + $0x8] sm:$0xff]
        %v577 = vld [vmem:[%s2 + $0x10] sm:$0xff]
        %v578 = vld [vmem:[%s2 + $0x18] sm:$0xff]
        %v579 = vld [vmem:[%s2 + $0x20] sm:$0xff]
        %v580 = vld [vmem:[%s2 + $0x28] sm:$0xff]
        %v581 = vld [vmem:[%s2 + $0x30] sm:$0xff]
        %v582 = vld [vmem:[%s2 + $0x38] sm:$0xff]
        %v583 = vld [vmem:[%s3] sm:$0x1]
        %v585 = vperm.slane %v583, 0
        %vm587 = vcmask 523264
        %v589 = vsel %vm587, %v573, 0
        %v592 = vsel %vm587, %v574, 0
        %594 = vmatpush.msra.mxu0 0.0
        %595 = vmatpush.msra.mxu0 0.0
        %596 = vmatpush.msra.mxu0 0.0
        %597 = vmatpush.msra.mxu0 0.0
        %598 = vmatpush.msra.mxu0 0.0
        %599 = vmatpush.msra.mxu0 0.0
        %600 = vmatpush.msra.mxu0 0.0
        %601 = vmatpush.msra.mxu0 0.0
        %602 = vmatpush.msra.mxu0 %v582
        %603 = vmatpush.msra.mxu0 %v581
        %604 = vmatpush.msra.mxu0 %v580
        %605 = vmatpush.msra.mxu0 %v579
        %606 = vmatpush.msra.mxu0 %v578
        %607 = vmatpush.msra.mxu0 %v577
        %608 = vmatpush.msra.mxu0 %v576
        %609 = vmatpush.msra.mxu0 %v575
        %610 = vmatmul.f32.gmra.mxu0 %v589
        %v611 = vpop.f32.mrf.mxu0
        %v612 = vadd.f32 %v585, %v611
        %613 = vmatmul.f32.gmra.mxu0 %v592
        %v614 = vpop.f32.mrf.mxu0
        %v615 = vadd.f32 %v585, %v614
        %616 = vdwg.mxu0
        %v617 = vld [vmem:[%s1] sm:$0xff]
        %v618 = vld [vmem:[%s1 + $0x8] sm:$0xff]
        %v619 = vadd.f32 %v612, %v617
        %v620 = vadd.f32 %v615, %v618
        %v621 = vld [vmem:[%s4] sm:$0x1]
        %v622 = vld [vmem:[%s5] sm:$0x1]
        %vm623 = vcmask 261120
        %v624 = vsel %vm623, %v619, 0.0
        %625 = vadd.xlane.f32.xlu0 %v624
        %v626 = vpop.xlane.xlu0 %625
        %v627 = vsel %vm623, %v620, 0.0
        %628 = vadd.xlane.f32.xlu0 %v627
        %v629 = vpop.xlane.xlu0 %628
        %v630 = vrcp.pop 32.0
        %v631 = vmul.f32 32.0, %v630
        %v632 = vsub.f32 1.0, %v631
        %v633 = vmul.f32 %v630, %v632
        %v634 = vadd.f32 %v630, %v633
        %vm635 = vweird.f32 %v630
        %v636 = vsel %vm635, %v630, %v634
        %v637 = vmul.f32 %v626, %v636
        %v638 = vmul.f32 %v629, %v636
        %v639 = vsub.f32 %v619, %v637
        %v640 = vsub.f32 %v620, %v638
        %v641 = vmul.f32 %v639, %v639
        %v642 = vmul.f32 %v640, %v640
        %v643 = vsel %vm623, %v641, 0.0
        %644 = vadd.xlane.f32.xlu0 %v643
        %v645 = vpop.xlane.xlu0 %644
        %v646 = vsel %vm623, %v642, 0.0
        %647 = vadd.xlane.f32.xlu0 %v646
        %v648 = vpop.xlane.xlu0 %647
        %v649 = vmul.f32 %v645, %v636
        %v650 = vmul.f32 %v648, %v636
        %v651 = vadd.f32 %v649, 1e-06
        %v652 = vadd.f32 %v650, 1e-06
        %v653 = vrsqrt.pop %v651
        %v654 = vmul.f32 %v653, %v651
        %v655 = vmul.f32 %v654, %v653
        %v656 = vmul.f32 0.5, %v655
        %v657 = vsub.f32 1.5, %v656
        %v658 = vmul.f32 %v653, %v657
        %vm659 = vweird.f32 %v651
        %vm660 = vweird.f32 %v653
        %vm661 = vmor %vm659, %vm660
        %v662 = vsel %vm661, %v653, %v658
        %v663 = vrsqrt.pop %v652
        %v664 = vmul.f32 %v663, %v652
        %v665 = vmul.f32 %v664, %v663
        %v666 = vmul.f32 0.5, %v665
        %v667 = vsub.f32 1.5, %v666
        %v668 = vmul.f32 %v663, %v667
        %vm669 = vweird.f32 %v652
        %vm670 = vweird.f32 %v663
        %vm671 = vmor %vm669, %vm670
        %v672 = vsel %vm671, %v663, %v668
        %v673 = vmul.f32 %v639, %v662
        %v674 = vmul.f32 %v640, %v672
        %v676 = vperm.slane %v621, 0
        %v678 = vmul.f32 %v673, %v676
        %v679 = vmul.f32 %v674, %v676
        %v681 = vperm.slane %v622, 0
        %v683 = vadd.f32 %v678, %v681
        %v684 = vadd.f32 %v679, %v681
        %v685 = vld [vmem:[%s6] sm:$0xff]
        %v686 = vld [vmem:[%s6 + $0x8] sm:$0xff]
        %v687 = vld [vmem:[%s6 + $0x10] sm:$0xff]
        %v688 = vld [vmem:[%s6 + $0x18] sm:$0xff]
        %v689 = vld [vmem:[%s7] sm:$0x1]
        %v691 = vperm.slane %v689, 0
        %v694 = vsel %vm623, %v683, 0
        %v697 = vsel %vm623, %v684, 0
        %699 = vmatpush.msra.mxu0 0.0
        %700 = vmatpush.msra.mxu0 0.0
        %701 = vmatpush.msra.mxu0 0.0
        %702 = vmatpush.msra.mxu0 0.0
        %703 = vmatpush.msra.mxu0 0.0
        %704 = vmatpush.msra.mxu0 0.0
        %705 = vmatpush.msra.mxu0 0.0
        %706 = vmatpush.msra.mxu0 0.0
        %707 = vmatpush.msra.mxu0 0.0
        %708 = vmatpush.msra.mxu0 0.0
        %709 = vmatpush.msra.mxu0 0.0
        %710 = vmatpush.msra.mxu0 0.0
        %711 = vmatpush.msra.mxu0 %v688
        %712 = vmatpush.msra.mxu0 %v687
        %713 = vmatpush.msra.mxu0 %v686
        %714 = vmatpush.msra.mxu0 %v685
        %715 = vmatmul.f32.gmra.mxu0 %v694
        %v716 = vpop.f32.mrf.mxu0
        %v717 = vadd.f32 %v691, %v716
        %718 = vmatmul.f32.gmra.mxu0 %v697
        %v719 = vpop.f32.mrf.mxu0
        %v720 = vadd.f32 %v691, %v719
        %721 = vdwg.mxu0
        %v722 = vld [vmem:[%s8] sm:$0xff]
        %v723 = vld [vmem:[%s8 + $0x8] sm:$0xff]
        %v724 = vld [vmem:[%s8 + $0x10] sm:$0xff]
        %v725 = vld [vmem:[%s8 + $0x18] sm:$0xff]
        %728 = vrot.lane.b32.xlu0 %v717, 96
        %v729 = vpop.permute.xlu0 %728
        %730 = vrot.lane.b32.xlu0 %v720, 96
        %v731 = vpop.permute.xlu0 %730
        %vm732 = vcmask 130048
        %v733 = vsel %vm732, %v717, 0
        %v735 = vsel %vm732, %v720, 0
        %v737 = vsel %vm732, %v729, 0
        %v739 = vsel %vm732, %v731, 0
        %741 = vmatpush.xpose.msra.mxu0 0.0
        %742 = vmatpush.xpose.msra.mxu0 0.0
        %743 = vmatpush.xpose.msra.mxu0 0.0
        %744 = vmatpush.xpose.msra.mxu0 0.0
        %745 = vmatpush.xpose.msra.mxu0 0.0
        %746 = vmatpush.xpose.msra.mxu0 0.0
        %747 = vmatpush.xpose.msra.mxu0 0.0
        %748 = vmatpush.xpose.msra.mxu0 0.0
        %749 = vmatpush.xpose.msra.mxu0 0.0
        %750 = vmatpush.xpose.msra.mxu0 0.0
        %751 = vmatpush.xpose.msra.mxu0 0.0
        %752 = vmatpush.xpose.msra.mxu0 0.0
        %753 = vmatpush.xpose.msra.mxu0 0.0
        %754 = vmatpush.xpose.msra.mxu0 0.0
        %755 = vmatpush.xpose.msra.mxu0 %v739
        %756 = vmatpush.xpose.msra.mxu0 %v737
        %757 = vmatmul.f32.gmra.mxu0 %v733
        %v758 = vpop.f32.mrf.mxu0
        %v759 = vadd.f32 0.0, %v758
        %760 = vmatmul.f32.gmra.mxu0 %v735
        %v761 = vpop.f32.mrf.mxu0
        %v762 = vadd.f32 0.0, %v761
        %763 = vdwg.mxu0
        %v764 = vmul.f32 %v759, 0.25
        %v765 = vmul.f32 %v762, 0.25
        %v766 = vsel %vm732, %v764, -inf
        %767 = vmax.xlane.f32.xlu0 %v766
        %v768 = vpop.xlane.xlu0 %767
        %v769 = vsel %vm732, %v765, -inf
        %770 = vmax.xlane.f32.xlu0 %v769
        %v771 = vpop.xlane.xlu0 %770
        %v772 = vsub.f32 %v764, %v768
        %v773 = vsub.f32 %v765, %v771
        %v774 = vmul.f32 %v772, 1.442695
        %v775 = vpow.pop %v774
        %v776 = vmul.f32 %v773, 1.442695
        %v777 = vpow.pop %v776
        %v778 = vsel %vm732, %v775, 0.0
        %779 = vadd.xlane.f32.xlu0 %v778
        %v780 = vpop.xlane.xlu0 %779
        %v781 = vsel %vm732, %v777, 0.0
        %782 = vadd.xlane.f32.xlu0 %v781
        %v783 = vpop.xlane.xlu0 %782
        %v784 = vrcp.pop %v780
        %v785 = vrcp.pop %v783
        %v786 = vmul.f32 %v775, %v784
        %v787 = vmul.f32 %v777, %v785
        %788 = vrot.lane.b32.xlu0 %v717, 64
        %v789 = vpop.permute.xlu0 %788
        %790 = vrot.lane.b32.xlu0 %v720, 64
        %v791 = vpop.permute.xlu0 %790
        %v795 = vsel %vm732, %v786, 0
        %v798 = vsel %vm732, %v787, 0
        %800 = vmatpush.msra.mxu0 0.0
        %801 = vmatpush.msra.mxu0 0.0
        %802 = vmatpush.msra.mxu0 0.0
        %803 = vmatpush.msra.mxu0 0.0
        %804 = vmatpush.msra.mxu0 0.0
        %805 = vmatpush.msra.mxu0 0.0
        %806 = vmatpush.msra.mxu0 0.0
        %807 = vmatpush.msra.mxu0 0.0
        %808 = vmatpush.msra.mxu0 0.0
        %809 = vmatpush.msra.mxu0 0.0
        %810 = vmatpush.msra.mxu0 0.0
        %811 = vmatpush.msra.mxu0 0.0
        %812 = vmatpush.msra.mxu0 0.0
        %813 = vmatpush.msra.mxu0 0.0
        %814 = vmatpush.msra.mxu0 %v791
        %815 = vmatpush.msra.mxu0 %v789
        %816 = vmatmul.f32.gmra.mxu0 %v795
        %v817 = vpop.f32.mrf.mxu0
        %v818 = vadd.f32 0.0, %v817
        %819 = vmatmul.f32.gmra.mxu0 %v798
        %v820 = vpop.f32.mrf.mxu0
        %v821 = vadd.f32 0.0, %v820
        %822 = vdwg.mxu0
        %823 = vrot.lane.b32.xlu0 %v717, 112
        %v824 = vpop.permute.xlu0 %823
        %825 = vrot.lane.b32.xlu0 %v720, 112
        %v826 = vpop.permute.xlu0 %825
        %827 = vrot.lane.b32.xlu0 %v717, 80
        %v828 = vpop.permute.xlu0 %827
        %829 = vrot.lane.b32.xlu0 %v720, 80
        %v830 = vpop.permute.xlu0 %829
        %v831 = vsel %vm732, %v824, 0
        %v833 = vsel %vm732, %v826, 0
        %v835 = vsel %vm732, %v828, 0
        %v837 = vsel %vm732, %v830, 0
        %839 = vmatpush.xpose.msra.mxu0 0.0
        %840 = vmatpush.xpose.msra.mxu0 0.0
        %841 = vmatpush.xpose.msra.mxu0 0.0
        %842 = vmatpush.xpose.msra.mxu0 0.0
        %843 = vmatpush.xpose.msra.mxu0 0.0
        %844 = vmatpush.xpose.msra.mxu0 0.0
        %845 = vmatpush.xpose.msra.mxu0 0.0
        %846 = vmatpush.xpose.msra.mxu0 0.0
        %847 = vmatpush.xpose.msra.mxu0 0.0
        %848 = vmatpush.xpose.msra.mxu0 0.0
        %849 = vmatpush.xpose.msra.mxu0 0.0
        %850 = vmatpush.xpose.msra.mxu0 0.0
        %851 = vmatpush.xpose.msra.mxu0 0.0
        %852 = vmatpush.xpose.msra.mxu0 0.0
        %853 = vmatpush.xpose.msra.mxu0 %v837
        %854 = vmatpush.xpose.msra.mxu0 %v835
        %855 = vmatmul.f32.gmra.mxu0 %v831
        %v856 = vpop.f32.mrf.mxu0
        %v857 = vadd.f32 0.0, %v856
        %858 = vmatmul.f32.gmra.mxu0 %v833
        %v859 = vpop.f32.mrf.mxu0
        %v860 = vadd.f32 0.0, %v859
        %861 = vdwg.mxu0
        %v862 = vmul.f32 %v857, 0.25
        %v863 = vmul.f32 %v860, 0.25
        %v864 = vsel %vm732, %v862, -inf
        %865 = vmax.xlane.f32.xlu0 %v864
        %v866 = vpop.xlane.xlu0 %865
        %v867 = vsel %vm732, %v863, -inf
        %868 = vmax.xlane.f32.xlu0 %v867
        %v869 = vpop.xlane.xlu0 %868
        %v870 = vsub.f32 %v862, %v866
        %v871 = vsub.f32 %v863, %v869
        %v872 = vmul.f32 %v870, 1.442695
        %v873 = vpow.pop %v872
        %v874 = vmul.f32 %v871, 1.442695
        %v875 = vpow.pop %v874
        %v876 = vsel %vm732, %v873, 0.0
        %877 = vadd.xlane.f32.xlu0 %v876
        %v878 = vpop.xlane.xlu0 %877
        %v879 = vsel %vm732, %v875, 0.0
        %880 = vadd.xlane.f32.xlu0 %v879
        %v881 = vpop.xlane.xlu0 %880
        %v882 = vrcp.pop %v878
        %v883 = vrcp.pop %v881
        %v884 = vmul.f32 %v873, %v882
        %v885 = vmul.f32 %v875, %v883
        %886 = vrot.lane.b32.xlu0 %v717, 48
        %v887 = vpop.permute.xlu0 %886
        %888 = vrot.lane.b32.xlu0 %v720, 48
        %v889 = vpop.permute.xlu0 %888
        %v893 = vsel %vm732, %v884, 0
        %v896 = vsel %vm732, %v885, 0
        %898 = vmatpush.msra.mxu0 0.0
        %899 = vmatpush.msra.mxu0 0.0
        %900 = vmatpush.msra.mxu0 0.0
        %901 = vmatpush.msra.mxu0 0.0
        %902 = vmatpush.msra.mxu0 0.0
        %903 = vmatpush.msra.mxu0 0.0
        %904 = vmatpush.msra.mxu0 0.0
        %905 = vmatpush.msra.mxu0 0.0
        %906 = vmatpush.msra.mxu0 0.0
        %907 = vmatpush.msra.mxu0 0.0
        %908 = vmatpush.msra.mxu0 0.0
        %909 = vmatpush.msra.mxu0 0.0
        %910 = vmatpush.msra.mxu0 0.0
        %911 = vmatpush.msra.mxu0 0.0
        %912 = vmatpush.msra.mxu0 %v889
        %913 = vmatpush.msra.mxu0 %v887
        %914 = vmatmul.f32.gmra.mxu0 %v893
        %v915 = vpop.f32.mrf.mxu0
        %v916 = vadd.f32 0.0, %v915
        %917 = vmatmul.f32.gmra.mxu0 %v896
        %v918 = vpop.f32.mrf.mxu0
        %v919 = vadd.f32 0.0, %v918
        %920 = vdwg.mxu0
        %v922 = vsel %vm732, %v916, 0
        %v925 = vsel %vm732, %v919, 0
        %927 = vmatpush.msra.mxu0 0.0
        %928 = vmatpush.msra.mxu0 0.0
        %929 = vmatpush.msra.mxu0 0.0
        %930 = vmatpush.msra.mxu0 0.0
        %931 = vmatpush.msra.mxu0 0.0
        %932 = vmatpush.msra.mxu0 0.0
        %933 = vmatpush.msra.mxu0 0.0
        %934 = vmatpush.msra.mxu0 0.0
        %935 = vmatpush.msra.mxu0 0.0
        %936 = vmatpush.msra.mxu0 0.0
        %937 = vmatpush.msra.mxu0 0.0
        %938 = vmatpush.msra.mxu0 0.0
        %939 = vmatpush.msra.mxu0 0.0
        %940 = vmatpush.msra.mxu0 0.0
        %941 = vmatpush.msra.mxu0 %v725
        %942 = vmatpush.msra.mxu0 %v724
        %943 = vmatmul.f32.gmra.mxu0 %v922
        %v944 = vpop.f32.mrf.mxu0
        %v945 = vadd.f32 0.0, %v944
        %946 = vmatmul.f32.gmra.mxu0 %v925
        %v947 = vpop.f32.mrf.mxu0
        %v948 = vadd.f32 0.0, %v947
        %949 = vdwg.mxu0
        %v951 = vsel %vm732, %v818, 0
        %v954 = vsel %vm732, %v821, 0
        %956 = vmatpush.msra.mxu0 0.0
        %957 = vmatpush.msra.mxu0 0.0
        %958 = vmatpush.msra.mxu0 0.0
        %959 = vmatpush.msra.mxu0 0.0
        %960 = vmatpush.msra.mxu0 0.0
        %961 = vmatpush.msra.mxu0 0.0
        %962 = vmatpush.msra.mxu0 0.0
        %963 = vmatpush.msra.mxu0 0.0
        %964 = vmatpush.msra.mxu0 0.0
        %965 = vmatpush.msra.mxu0 0.0
        %966 = vmatpush.msra.mxu0 0.0
        %967 = vmatpush.msra.mxu0 0.0
        %968 = vmatpush.msra.mxu0 0.0
        %969 = vmatpush.msra.mxu0 0.0
        %970 = vmatpush.msra.mxu0 %v723
        %971 = vmatpush.msra.mxu0 %v722
        %972 = vmatmul.f32.gmra.mxu0 %v951
        %v973 = vpop.f32.mrf.mxu0
        %v974 = vadd.f32 %v945, %v973
        %975 = vmatmul.f32.gmra.mxu0 %v954
        %v976 = vpop.f32.mrf.mxu0
        %v977 = vadd.f32 %v948, %v976
        %978 = vdwg.mxu0
        %v979 = vadd.f32 %v619, %v974
        %v980 = vadd.f32 %v620, %v977
        %v981 = vld [vmem:[%s9] sm:$0x1]
        %v983 = vperm.slane %v981, 0
        %v985 = vadd.f32 %v979, %v983
        %v986 = vadd.f32 %v980, %v983
        %v987 = vld [vmem:[%s10] sm:$0x1]
        %v988 = vld [vmem:[%s11] sm:$0x1]
        %v989 = vsel %vm623, %v985, 0.0
        %990 = vadd.xlane.f32.xlu0 %v989
        %v991 = vpop.xlane.xlu0 %990
        %v992 = vsel %vm623, %v986, 0.0
        %993 = vadd.xlane.f32.xlu0 %v992
        %v994 = vpop.xlane.xlu0 %993
        %v995 = vmul.f32 %v991, %v636
        %v996 = vmul.f32 %v994, %v636
        %v997 = vsub.f32 %v985, %v995
        %v998 = vsub.f32 %v986, %v996
        %v999 = vmul.f32 %v997, %v997
        %v1000 = vmul.f32 %v998, %v998
        %v1001 = vsel %vm623, %v999, 0.0
        %1002 = vadd.xlane.f32.xlu0 %v1001
        %v1003 = vpop.xlane.xlu0 %1002
        %v1004 = vsel %vm623, %v1000, 0.0
        %1005 = vadd.xlane.f32.xlu0 %v1004
        %v1006 = vpop.xlane.xlu0 %1005
        %v1007 = vmul.f32 %v1003, %v636
        %v1008 = vmul.f32 %v1006, %v636
        %v1009 = vadd.f32 %v1007, 1e-06
        %v1010 = vadd.f32 %v1008, 1e-06
        %v1011 = vrsqrt.pop %v1009
        %v1012 = vmul.f32 %v1011, %v1009
        %v1013 = vmul.f32 %v1012, %v1011
        %v1014 = vmul.f32 0.5, %v1013
        %v1015 = vsub.f32 1.5, %v1014
        %v1016 = vmul.f32 %v1011, %v1015
        %vm1017 = vweird.f32 %v1009
        %vm1018 = vweird.f32 %v1011
        %vm1019 = vmor %vm1017, %vm1018
        %v1020 = vsel %vm1019, %v1011, %v1016
        %v1021 = vrsqrt.pop %v1010
        %v1022 = vmul.f32 %v1021, %v1010
        %v1023 = vmul.f32 %v1022, %v1021
        %v1024 = vmul.f32 0.5, %v1023
        %v1025 = vsub.f32 1.5, %v1024
        %v1026 = vmul.f32 %v1021, %v1025
        %vm1027 = vweird.f32 %v1010
        %vm1028 = vweird.f32 %v1021
        %vm1029 = vmor %vm1027, %vm1028
        %v1030 = vsel %vm1029, %v1021, %v1026
        %v1031 = vmul.f32 %v997, %v1020
        %v1032 = vmul.f32 %v998, %v1030
        %v1034 = vperm.slane %v987, 0
        %v1036 = vmul.f32 %v1031, %v1034
        %v1037 = vmul.f32 %v1032, %v1034
        %v1039 = vperm.slane %v988, 0
        %v1041 = vadd.f32 %v1036, %v1039
        %v1042 = vadd.f32 %v1037, %v1039
        %v1043 = vld [vmem:[%s12] sm:$0xff]
        %v1044 = vld [vmem:[%s12 + $0x8] sm:$0xff]
        %v1045 = vld [vmem:[%s12 + $0x10] sm:$0xff]
        %v1046 = vld [vmem:[%s12 + $0x18] sm:$0xff]
        %v1047 = vld [vmem:[%s13] sm:$0x1]
        %v1049 = vperm.slane %v1047, 0
        %v1052 = vsel %vm623, %v1041, 0
        %v1055 = vsel %vm623, %v1042, 0
        %1057 = vmatpush.msra.mxu0 0.0
        %1058 = vmatpush.msra.mxu0 0.0
        %1059 = vmatpush.msra.mxu0 0.0
        %1060 = vmatpush.msra.mxu0 0.0
        %1061 = vmatpush.msra.mxu0 0.0
        %1062 = vmatpush.msra.mxu0 0.0
        %1063 = vmatpush.msra.mxu0 0.0
        %1064 = vmatpush.msra.mxu0 0.0
        %1065 = vmatpush.msra.mxu0 0.0
        %1066 = vmatpush.msra.mxu0 0.0
        %1067 = vmatpush.msra.mxu0 0.0
        %1068 = vmatpush.msra.mxu0 0.0
        %1069 = vmatpush.msra.mxu0 %v1046
        %1070 = vmatpush.msra.mxu0 %v1045
        %1071 = vmatpush.msra.mxu0 %v1044
        %1072 = vmatpush.msra.mxu0 %v1043
        %1073 = vmatmul.f32.gmra.mxu0 %v1052
        %v1074 = vpop.f32.mrf.mxu0
        %v1075 = vadd.f32 %v1049, %v1074
        %1076 = vmatmul.f32.gmra.mxu0 %v1055
        %v1077 = vpop.f32.mrf.mxu0
        %v1078 = vadd.f32 %v1049, %v1077
        %1079 = vdwg.mxu0
        %v1080 = vmul.f32 %v1075, 0.5
        %v1081 = vmul.f32 %v1078, 0.5
        %v1082 = vmul.f32 %v1075, 0.044715
        %v1083 = vmul.f32 %v1078, 0.044715
        %v1084 = vmul.f32 %v1082, %v1075
        %v1085 = vmul.f32 %v1083, %v1078
        %v1086 = vmul.f32 %v1084, %v1075
        %v1087 = vmul.f32 %v1085, %v1078
        %v1088 = vadd.f32 %v1075, %v1086
        %v1089 = vadd.f32 %v1078, %v1087
        %v1090 = vmul.f32 %v1088, 0.7978846
        %v1091 = vmul.f32 %v1089, 0.7978846
        %v1092 = vtanh.pop %v1090
        %v1093 = vtanh.pop %v1091
        %v1094 = vadd.f32 %v1092, 1.0
        %v1095 = vadd.f32 %v1093, 1.0
        %v1096 = vmul.f32 %v1080, %v1094
        %v1097 = vmul.f32 %v1081, %v1095
        %v1098 = vld [vmem:[%s14] sm:$0xff]
        %v1099 = vld [vmem:[%s14 + $0x8] sm:$0xff]
        %v1100 = vld [vmem:[%s14 + $0x10] sm:$0xff]
        %v1101 = vld [vmem:[%s14 + $0x18] sm:$0xff]
        %v1102 = vld [vmem:[%s14 + $0x20] sm:$0xff]
        %v1103 = vld [vmem:[%s14 + $0x28] sm:$0xff]
        %v1104 = vld [vmem:[%s14 + $0x30] sm:$0xff]
        %v1105 = vld [vmem:[%s14 + $0x38] sm:$0xff]
        %v1106 = vld [vmem:[%s14 + $0x40] sm:$0xff]
        %v1107 = vld [vmem:[%s14 + $0x48] sm:$0xff]
        %v1108 = vld [vmem:[%s14 + $0x50] sm:$0xff]
        %v1109 = vld [vmem:[%s14 + $0x58] sm:$0xff]
        %v1110 = vld [vmem:[%s14 + $0x60] sm:$0xff]
        %v1111 = vld [vmem:[%s14 + $0x68] sm:$0xff]
        %v1112 = vld [vmem:[%s14 + $0x70] sm:$0xff]
        %v1113 = vld [vmem:[%s14 + $0x78] sm:$0xff]
        %v1114 = vld [vmem:[%s15] sm:$0x1]
        %v1116 = vperm.slane %v1114, 0
        %1118 = vmatpush.msra.mxu0 %v1113
        %1119 = vmatpush.msra.mxu0 %v1112
        %1120 = vmatpush.msra.mxu0 %v1111
        %1121 = vmatpush.msra.mxu0 %v1110
        %1122 = vmatpush.msra.mxu0 %v1109
        %1123 = vmatpush.msra.mxu0 %v1108
        %1124 = vmatpush.msra.mxu0 %v1107
        %1125 = vmatpush.msra.mxu0 %v1106
        %1126 = vmatpush.msra.mxu0 %v1105
        %1127 = vmatpush.msra.mxu0 %v1104
        %1128 = vmatpush.msra.mxu0 %v1103
        %1129 = vmatpush.msra.mxu0 %v1102
        %1130 = vmatpush.msra.mxu0 %v1101
        %1131 = vmatpush.msra.mxu0 %v1100
        %1132 = vmatpush.msra.mxu0 %v1099
        %1133 = vmatpush.msra.mxu0 %v1098
        %1134 = vmatmul.f32.gmra.mxu0 %v1096
        %v1135 = vpop.f32.mrf.mxu0
        %v1136 = vadd.f32 %v1116, %v1135
        %1137 = vmatmul.f32.gmra.mxu0 %v1097
        %v1138 = vpop.f32.mrf.mxu0
        %v1139 = vadd.f32 %v1116, %v1138
        %1140 = vdwg.mxu0
        %v1141 = vadd.f32 %v985, %v1136
        %v1142 = vadd.f32 %v986, %v1139
        %s1143 = scalar_lea.vmem %s4, 1
        %v1144 = vld [vmem:[%s1143] sm:$0x1]
        %s1145 = scalar_lea.vmem %s5, 1
        %v1146 = vld [vmem:[%s1145] sm:$0x1]
        %v1147 = vsel %vm623, %v1141, 0.0
        %1148 = vadd.xlane.f32.xlu0 %v1147
        %v1149 = vpop.xlane.xlu0 %1148
        %v1150 = vsel %vm623, %v1142, 0.0
        %1151 = vadd.xlane.f32.xlu0 %v1150
        %v1152 = vpop.xlane.xlu0 %1151
        %v1153 = vmul.f32 %v1149, %v636
        %v1154 = vmul.f32 %v1152, %v636
        %v1155 = vsub.f32 %v1141, %v1153
        %v1156 = vsub.f32 %v1142, %v1154
        %v1157 = vmul.f32 %v1155, %v1155
        %v1158 = vmul.f32 %v1156, %v1156
        %v1159 = vsel %vm623, %v1157, 0.0
        %1160 = vadd.xlane.f32.xlu0 %v1159
        %v1161 = vpop.xlane.xlu0 %1160
        %v1162 = vsel %vm623, %v1158, 0.0
        %1163 = vadd.xlane.f32.xlu0 %v1162
        %v1164 = vpop.xlane.xlu0 %1163
        %v1165 = vmul.f32 %v1161, %v636
        %v1166 = vmul.f32 %v1164, %v636
        %v1167 = vadd.f32 %v1165, 1e-06
        %v1168 = vadd.f32 %v1166, 1e-06
        %v1169 = vrsqrt.pop %v1167
        %v1170 = vmul.f32 %v1169, %v1167
        %v1171 = vmul.f32 %v1170, %v1169
        %v1172 = vmul.f32 0.5, %v1171
        %v1173 = vsub.f32 1.5, %v1172
        %v1174 = vmul.f32 %v1169, %v1173
        %vm1175 = vweird.f32 %v1167
        %vm1176 = vweird.f32 %v1169
        %vm1177 = vmor %vm1175, %vm1176
        %v1178 = vsel %vm1177, %v1169, %v1174
        %v1179 = vrsqrt.pop %v1168
        %v1180 = vmul.f32 %v1179, %v1168
        %v1181 = vmul.f32 %v1180, %v1179
        %v1182 = vmul.f32 0.5, %v1181
        %v1183 = vsub.f32 1.5, %v1182
        %v1184 = vmul.f32 %v1179, %v1183
        %vm1185 = vweird.f32 %v1168
        %vm1186 = vweird.f32 %v1179
        %vm1187 = vmor %vm1185, %vm1186
        %v1188 = vsel %vm1187, %v1179, %v1184
        %v1189 = vmul.f32 %v1155, %v1178
        %v1190 = vmul.f32 %v1156, %v1188
        %v1192 = vperm.slane %v1144, 0
        %v1194 = vmul.f32 %v1189, %v1192
        %v1195 = vmul.f32 %v1190, %v1192
        %v1197 = vperm.slane %v1146, 0
        %v1199 = vadd.f32 %v1194, %v1197
        %v1200 = vadd.f32 %v1195, %v1197
        %s1201 = scalar_lea.vmem %s6, 32
        %v1202 = vld [vmem:[%s1201] sm:$0xff]
        %v1203 = vld [vmem:[%s1201 + $0x8] sm:$0xff]
        %v1204 = vld [vmem:[%s1201 + $0x10] sm:$0xff]
        %v1205 = vld [vmem:[%s1201 + $0x18] sm:$0xff]
        %s1206 = scalar_lea.vmem %s7, 1
        %v1207 = vld [vmem:[%s1206] sm:$0x1]
        %v1209 = vperm.slane %v1207, 0
        %v1212 = vsel %vm623, %v1199, 0
        %v1215 = vsel %vm623, %v1200, 0
        %1217 = vmatpush.msra.mxu0 0.0
        %1218 = vmatpush.msra.mxu0 0.0
        %1219 = vmatpush.msra.mxu0 0.0
        %1220 = vmatpush.msra.mxu0 0.0
        %1221 = vmatpush.msra.mxu0 0.0
        %1222 = vmatpush.msra.mxu0 0.0
        %1223 = vmatpush.msra.mxu0 0.0
        %1224 = vmatpush.msra.mxu0 0.0
        %1225 = vmatpush.msra.mxu0 0.0
        %1226 = vmatpush.msra.mxu0 0.0
        %1227 = vmatpush.msra.mxu0 0.0
        %1228 = vmatpush.msra.mxu0 0.0
        %1229 = vmatpush.msra.mxu0 %v1205
        %1230 = vmatpush.msra.mxu0 %v1204
        %1231 = vmatpush.msra.mxu0 %v1203
        %1232 = vmatpush.msra.mxu0 %v1202
        %1233 = vmatmul.f32.gmra.mxu0 %v1212
        %v1234 = vpop.f32.mrf.mxu0
        %v1235 = vadd.f32 %v1209, %v1234
        %1236 = vmatmul.f32.gmra.mxu0 %v1215
        %v1237 = vpop.f32.mrf.mxu0
        %v1238 = vadd.f32 %v1209, %v1237
        %1239 = vdwg.mxu0
        %s1240 = scalar_lea.vmem %s8, 32
        %v1241 = vld [vmem:[%s1240] sm:$0xff]
        %v1242 = vld [vmem:[%s1240 + $0x8] sm:$0xff]
        %v1243 = vld [vmem:[%s1240 + $0x10] sm:$0xff]
        %v1244 = vld [vmem:[%s1240 + $0x18] sm:$0xff]
        %1247 = vrot.lane.b32.xlu0 %v1235, 96
        %v1248 = vpop.permute.xlu0 %1247
        %1249 = vrot.lane.b32.xlu0 %v1238, 96
        %v1250 = vpop.permute.xlu0 %1249
        %v1251 = vsel %vm732, %v1235, 0
        %v1253 = vsel %vm732, %v1238, 0
        %v1255 = vsel %vm732, %v1248, 0
        %v1257 = vsel %vm732, %v1250, 0
        %1259 = vmatpush.xpose.msra.mxu0 0.0
        %1260 = vmatpush.xpose.msra.mxu0 0.0
        %1261 = vmatpush.xpose.msra.mxu0 0.0
        %1262 = vmatpush.xpose.msra.mxu0 0.0
        %1263 = vmatpush.xpose.msra.mxu0 0.0
        %1264 = vmatpush.xpose.msra.mxu0 0.0
        %1265 = vmatpush.xpose.msra.mxu0 0.0
        %1266 = vmatpush.xpose.msra.mxu0 0.0
        %1267 = vmatpush.xpose.msra.mxu0 0.0
        %1268 = vmatpush.xpose.msra.mxu0 0.0
        %1269 = vmatpush.xpose.msra.mxu0 0.0
        %1270 = vmatpush.xpose.msra.mxu0 0.0
        %1271 = vmatpush.xpose.msra.mxu0 0.0
        %1272 = vmatpush.xpose.msra.mxu0 0.0
        %1273 = vmatpush.xpose.msra.mxu0 %v1257
        %1274 = vmatpush.xpose.msra.mxu0 %v1255
        %1275 = vmatmul.f32.gmra.mxu0 %v1251
        %v1276 = vpop.f32.mrf.mxu0
        %v1277 = vadd.f32 0.0, %v1276
        %1278 = vmatmul.f32.gmra.mxu0 %v1253
        %v1279 = vpop.f32.mrf.mxu0
        %v1280 = vadd.f32 0.0, %v1279
        %1281 = vdwg.mxu0
        %v1282 = vmul.f32 %v1277, 0.25
        %v1283 = vmul.f32 %v1280, 0.25
        %v1284 = vsel %vm732, %v1282, -inf
        %1285 = vmax.xlane.f32.xlu0 %v1284
        %v1286 = vpop.xlane.xlu0 %1285
        %v1287 = vsel %vm732, %v1283, -inf
        %1288 = vmax.xlane.f32.xlu0 %v1287
        %v1289 = vpop.xlane.xlu0 %1288
        %v1290 = vsub.f32 %v1282, %v1286
        %v1291 = vsub.f32 %v1283, %v1289
        %v1292 = vmul.f32 %v1290, 1.442695
        %v1293 = vpow.pop %v1292
        %v1294 = vmul.f32 %v1291, 1.442695
        %v1295 = vpow.pop %v1294
        %v1296 = vsel %vm732, %v1293, 0.0
        %1297 = vadd.xlane.f32.xlu0 %v1296
        %v1298 = vpop.xlane.xlu0 %1297
        %v1299 = vsel %vm732, %v1295, 0.0
        %1300 = vadd.xlane.f32.xlu0 %v1299
        %v1301 = vpop.xlane.xlu0 %1300
        %v1302 = vrcp.pop %v1298
        %v1303 = vrcp.pop %v1301
        %v1304 = vmul.f32 %v1293, %v1302
        %v1305 = vmul.f32 %v1295, %v1303
        %1306 = vrot.lane.b32.xlu0 %v1235, 64
        %v1307 = vpop.permute.xlu0 %1306
        %1308 = vrot.lane.b32.xlu0 %v1238, 64
        %v1309 = vpop.permute.xlu0 %1308
        %v1313 = vsel %vm732, %v1304, 0
        %v1316 = vsel %vm732, %v1305, 0
        %1318 = vmatpush.msra.mxu0 0.0
        %1319 = vmatpush.msra.mxu0 0.0
        %1320 = vmatpush.msra.mxu0 0.0
        %1321 = vmatpush.msra.mxu0 0.0
        %1322 = vmatpush.msra.mxu0 0.0
        %1323 = vmatpush.msra.mxu0 0.0
        %1324 = vmatpush.msra.mxu0 0.0
        %1325 = vmatpush.msra.mxu0 0.0
        %1326 = vmatpush.msra.mxu0 0.0
        %1327 = vmatpush.msra.mxu0 0.0
        %1328 = vmatpush.msra.mxu0 0.0
        %1329 = vmatpush.msra.mxu0 0.0
        %1330 = vmatpush.msra.mxu0 0.0
        %1331 = vmatpush.msra.mxu0 0.0
        %1332 = vmatpush.msra.mxu0 %v1309
        %1333 = vmatpush.msra.mxu0 %v1307
        %1334 = vmatmul.f32.gmra.mxu0 %v1313
        %v1335 = vpop.f32.mrf.mxu0
        %v1336 = vadd.f32 0.0, %v1335
        %1337 = vmatmul.f32.gmra.mxu0 %v1316
        %v1338 = vpop.f32.mrf.mxu0
        %v1339 = vadd.f32 0.0, %v1338
        %1340 = vdwg.mxu0
        %1341 = vrot.lane.b32.xlu0 %v1235, 112
        %v1342 = vpop.permute.xlu0 %1341
        %1343 = vrot.lane.b32.xlu0 %v1238, 112
        %v1344 = vpop.permute.xlu0 %1343
        %1345 = vrot.lane.b32.xlu0 %v1235, 80
        %v1346 = vpop.permute.xlu0 %1345
        %1347 = vrot.lane.b32.xlu0 %v1238, 80
        %v1348 = vpop.permute.xlu0 %1347
        %v1349 = vsel %vm732, %v1342, 0
        %v1351 = vsel %vm732, %v1344, 0
        %v1353 = vsel %vm732, %v1346, 0
        %v1355 = vsel %vm732, %v1348, 0
        %1357 = vmatpush.xpose.msra.mxu0 0.0
        %1358 = vmatpush.xpose.msra.mxu0 0.0
        %1359 = vmatpush.xpose.msra.mxu0 0.0
        %1360 = vmatpush.xpose.msra.mxu0 0.0
        %1361 = vmatpush.xpose.msra.mxu0 0.0
        %1362 = vmatpush.xpose.msra.mxu0 0.0
        %1363 = vmatpush.xpose.msra.mxu0 0.0
        %1364 = vmatpush.xpose.msra.mxu0 0.0
        %1365 = vmatpush.xpose.msra.mxu0 0.0
        %1366 = vmatpush.xpose.msra.mxu0 0.0
        %1367 = vmatpush.xpose.msra.mxu0 0.0
        %1368 = vmatpush.xpose.msra.mxu0 0.0
        %1369 = vmatpush.xpose.msra.mxu0 0.0
        %1370 = vmatpush.xpose.msra.mxu0 0.0
        %1371 = vmatpush.xpose.msra.mxu0 %v1355
        %1372 = vmatpush.xpose.msra.mxu0 %v1353
        %1373 = vmatmul.f32.gmra.mxu0 %v1349
        %v1374 = vpop.f32.mrf.mxu0
        %v1375 = vadd.f32 0.0, %v1374
        %1376 = vmatmul.f32.gmra.mxu0 %v1351
        %v1377 = vpop.f32.mrf.mxu0
        %v1378 = vadd.f32 0.0, %v1377
        %1379 = vdwg.mxu0
        %v1380 = vmul.f32 %v1375, 0.25
        %v1381 = vmul.f32 %v1378, 0.25
        %v1382 = vsel %vm732, %v1380, -inf
        %1383 = vmax.xlane.f32.xlu0 %v1382
        %v1384 = vpop.xlane.xlu0 %1383
        %v1385 = vsel %vm732, %v1381, -inf
        %1386 = vmax.xlane.f32.xlu0 %v1385
        %v1387 = vpop.xlane.xlu0 %1386
        %v1388 = vsub.f32 %v1380, %v1384
        %v1389 = vsub.f32 %v1381, %v1387
        %v1390 = vmul.f32 %v1388, 1.442695
        %v1391 = vpow.pop %v1390
        %v1392 = vmul.f32 %v1389, 1.442695
        %v1393 = vpow.pop %v1392
        %v1394 = vsel %vm732, %v1391, 0.0
        %1395 = vadd.xlane.f32.xlu0 %v1394
        %v1396 = vpop.xlane.xlu0 %1395
        %v1397 = vsel %vm732, %v1393, 0.0
        %1398 = vadd.xlane.f32.xlu0 %v1397
        %v1399 = vpop.xlane.xlu0 %1398
        %v1400 = vrcp.pop %v1396
        %v1401 = vrcp.pop %v1399
        %v1402 = vmul.f32 %v1391, %v1400
        %v1403 = vmul.f32 %v1393, %v1401
        %1404 = vrot.lane.b32.xlu0 %v1235, 48
        %v1405 = vpop.permute.xlu0 %1404
        %1406 = vrot.lane.b32.xlu0 %v1238, 48
        %v1407 = vpop.permute.xlu0 %1406
        %v1411 = vsel %vm732, %v1402, 0
        %v1414 = vsel %vm732, %v1403, 0
        %1416 = vmatpush.msra.mxu0 0.0
        %1417 = vmatpush.msra.mxu0 0.0
        %1418 = vmatpush.msra.mxu0 0.0
        %1419 = vmatpush.msra.mxu0 0.0
        %1420 = vmatpush.msra.mxu0 0.0
        %1421 = vmatpush.msra.mxu0 0.0
        %1422 = vmatpush.msra.mxu0 0.0
        %1423 = vmatpush.msra.mxu0 0.0
        %1424 = vmatpush.msra.mxu0 0.0
        %1425 = vmatpush.msra.mxu0 0.0
        %1426 = vmatpush.msra.mxu0 0.0
        %1427 = vmatpush.msra.mxu0 0.0
        %1428 = vmatpush.msra.mxu0 0.0
        %1429 = vmatpush.msra.mxu0 0.0
        %1430 = vmatpush.msra.mxu0 %v1407
        %1431 = vmatpush.msra.mxu0 %v1405
        %1432 = vmatmul.f32.gmra.mxu0 %v1411
        %v1433 = vpop.f32.mrf.mxu0
        %v1434 = vadd.f32 0.0, %v1433
        %1435 = vmatmul.f32.gmra.mxu0 %v1414
        %v1436 = vpop.f32.mrf.mxu0
        %v1437 = vadd.f32 0.0, %v1436
        %1438 = vdwg.mxu0
        %v1440 = vsel %vm732, %v1434, 0
        %v1443 = vsel %vm732, %v1437, 0
        %1445 = vmatpush.msra.mxu0 0.0
        %1446 = vmatpush.msra.mxu0 0.0
        %1447 = vmatpush.msra.mxu0 0.0
        %1448 = vmatpush.msra.mxu0 0.0
        %1449 = vmatpush.msra.mxu0 0.0
        %1450 = vmatpush.msra.mxu0 0.0
        %1451 = vmatpush.msra.mxu0 0.0
        %1452 = vmatpush.msra.mxu0 0.0
        %1453 = vmatpush.msra.mxu0 0.0
        %1454 = vmatpush.msra.mxu0 0.0
        %1455 = vmatpush.msra.mxu0 0.0
        %1456 = vmatpush.msra.mxu0 0.0
        %1457 = vmatpush.msra.mxu0 0.0
        %1458 = vmatpush.msra.mxu0 0.0
        %1459 = vmatpush.msra.mxu0 %v1244
        %1460 = vmatpush.msra.mxu0 %v1243
        %1461 = vmatmul.f32.gmra.mxu0 %v1440
        %v1462 = vpop.f32.mrf.mxu0
        %v1463 = vadd.f32 0.0, %v1462
        %1464 = vmatmul.f32.gmra.mxu0 %v1443
        %v1465 = vpop.f32.mrf.mxu0
        %v1466 = vadd.f32 0.0, %v1465
        %1467 = vdwg.mxu0
        %v1469 = vsel %vm732, %v1336, 0
        %v1472 = vsel %vm732, %v1339, 0
        %1474 = vmatpush.msra.mxu0 0.0
        %1475 = vmatpush.msra.mxu0 0.0
        %1476 = vmatpush.msra.mxu0 0.0
        %1477 = vmatpush.msra.mxu0 0.0
        %1478 = vmatpush.msra.mxu0 0.0
        %1479 = vmatpush.msra.mxu0 0.0
        %1480 = vmatpush.msra.mxu0 0.0
        %1481 = vmatpush.msra.mxu0 0.0
        %1482 = vmatpush.msra.mxu0 0.0
        %1483 = vmatpush.msra.mxu0 0.0
        %1484 = vmatpush.msra.mxu0 0.0
        %1485 = vmatpush.msra.mxu0 0.0
        %1486 = vmatpush.msra.mxu0 0.0
        %1487 = vmatpush.msra.mxu0 0.0
        %1488 = vmatpush.msra.mxu0 %v1242
        %1489 = vmatpush.msra.mxu0 %v1241
        %1490 = vmatmul.f32.gmra.mxu0 %v1469
        %v1491 = vpop.f32.mrf.mxu0
        %v1492 = vadd.f32 %v1463, %v1491
        %1493 = vmatmul.f32.gmra.mxu0 %v1472
        %v1494 = vpop.f32.mrf.mxu0
        %v1495 = vadd.f32 %v1466, %v1494
        %1496 = vdwg.mxu0
        %v1497 = vadd.f32 %v1141, %v1492
        %v1498 = vadd.f32 %v1142, %v1495
        %s1499 = scalar_lea.vmem %s9, 1
        %v1500 = vld [vmem:[%s1499] sm:$0x1]
        %v1502 = vperm.slane %v1500, 0
        %v1504 = vadd.f32 %v1497, %v1502
        %v1505 = vadd.f32 %v1498, %v1502
        %s1506 = scalar_lea.vmem %s10, 1
        %v1507 = vld [vmem:[%s1506] sm:$0x1]
        %s1508 = scalar_lea.vmem %s11, 1
        %v1509 = vld [vmem:[%s1508] sm:$0x1]
        %v1510 = vsel %vm623, %v1504, 0.0
        %1511 = vadd.xlane.f32.xlu0 %v1510
        %v1512 = vpop.xlane.xlu0 %1511
        %v1513 = vsel %vm623, %v1505, 0.0
        %1514 = vadd.xlane.f32.xlu0 %v1513
        %v1515 = vpop.xlane.xlu0 %1514
        %v1516 = vmul.f32 %v1512, %v636
        %v1517 = vmul.f32 %v1515, %v636
        %v1518 = vsub.f32 %v1504, %v1516
        %v1519 = vsub.f32 %v1505, %v1517
        %v1520 = vmul.f32 %v1518, %v1518
        %v1521 = vmul.f32 %v1519, %v1519
        %v1522 = vsel %vm623, %v1520, 0.0
        %1523 = vadd.xlane.f32.xlu0 %v1522
        %v1524 = vpop.xlane.xlu0 %1523
        %v1525 = vsel %vm623, %v1521, 0.0
        %1526 = vadd.xlane.f32.xlu0 %v1525
        %v1527 = vpop.xlane.xlu0 %1526
        %v1528 = vmul.f32 %v1524, %v636
        %v1529 = vmul.f32 %v1527, %v636
        %v1530 = vadd.f32 %v1528, 1e-06
        %v1531 = vadd.f32 %v1529, 1e-06
        %v1532 = vrsqrt.pop %v1530
        %v1533 = vmul.f32 %v1532, %v1530
        %v1534 = vmul.f32 %v1533, %v1532
        %v1535 = vmul.f32 0.5, %v1534
        %v1536 = vsub.f32 1.5, %v1535
        %v1537 = vmul.f32 %v1532, %v1536
        %vm1538 = vweird.f32 %v1530
        %vm1539 = vweird.f32 %v1532
        %vm1540 = vmor %vm1538, %vm1539
        %v1541 = vsel %vm1540, %v1532, %v1537
        %v1542 = vrsqrt.pop %v1531
        %v1543 = vmul.f32 %v1542, %v1531
        %v1544 = vmul.f32 %v1543, %v1542
        %v1545 = vmul.f32 0.5, %v1544
        %v1546 = vsub.f32 1.5, %v1545
        %v1547 = vmul.f32 %v1542, %v1546
        %vm1548 = vweird.f32 %v1531
        %vm1549 = vweird.f32 %v1542
        %vm1550 = vmor %vm1548, %vm1549
        %v1551 = vsel %vm1550, %v1542, %v1547
        %v1552 = vmul.f32 %v1518, %v1541
        %v1553 = vmul.f32 %v1519, %v1551
        %v1555 = vperm.slane %v1507, 0
        %v1557 = vmul.f32 %v1552, %v1555
        %v1558 = vmul.f32 %v1553, %v1555
        %v1560 = vperm.slane %v1509, 0
        %v1562 = vadd.f32 %v1557, %v1560
        %v1563 = vadd.f32 %v1558, %v1560
        %s1564 = scalar_lea.vmem %s12, 32
        %v1565 = vld [vmem:[%s1564] sm:$0xff]
        %v1566 = vld [vmem:[%s1564 + $0x8] sm:$0xff]
        %v1567 = vld [vmem:[%s1564 + $0x10] sm:$0xff]
        %v1568 = vld [vmem:[%s1564 + $0x18] sm:$0xff]
        %s1569 = scalar_lea.vmem %s13, 1
        %v1570 = vld [vmem:[%s1569] sm:$0x1]
        %v1572 = vperm.slane %v1570, 0
        %v1575 = vsel %vm623, %v1562, 0
        %v1578 = vsel %vm623, %v1563, 0
        %1580 = vmatpush.msra.mxu0 0.0
        %1581 = vmatpush.msra.mxu0 0.0
        %1582 = vmatpush.msra.mxu0 0.0
        %1583 = vmatpush.msra.mxu0 0.0
        %1584 = vmatpush.msra.mxu0 0.0
        %1585 = vmatpush.msra.mxu0 0.0
        %1586 = vmatpush.msra.mxu0 0.0
        %1587 = vmatpush.msra.mxu0 0.0
        %1588 = vmatpush.msra.mxu0 0.0
        %1589 = vmatpush.msra.mxu0 0.0
        %1590 = vmatpush.msra.mxu0 0.0
        %1591 = vmatpush.msra.mxu0 0.0
        %1592 = vmatpush.msra.mxu0 %v1568
        %1593 = vmatpush.msra.mxu0 %v1567
        %1594 = vmatpush.msra.mxu0 %v1566
        %1595 = vmatpush.msra.mxu0 %v1565
        %1596 = vmatmul.f32.gmra.mxu0 %v1575
        %v1597 = vpop.f32.mrf.mxu0
        %v1598 = vadd.f32 %v1572, %v1597
        %1599 = vmatmul.f32.gmra.mxu0 %v1578
        %v1600 = vpop.f32.mrf.mxu0
        %v1601 = vadd.f32 %v1572, %v1600
        %1602 = vdwg.mxu0
        %v1603 = vmul.f32 %v1598, 0.5
        %v1604 = vmul.f32 %v1601, 0.5
        %v1605 = vmul.f32 %v1598, 0.044715
        %v1606 = vmul.f32 %v1601, 0.044715
        %v1607 = vmul.f32 %v1605, %v1598
        %v1608 = vmul.f32 %v1606, %v1601
        %v1609 = vmul.f32 %v1607, %v1598
        %v1610 = vmul.f32 %v1608, %v1601
        %v1611 = vadd.f32 %v1598, %v1609
        %v1612 = vadd.f32 %v1601, %v1610
        %v1613 = vmul.f32 %v1611, 0.7978846
        %v1614 = vmul.f32 %v1612, 0.7978846
        %v1615 = vtanh.pop %v1613
        %v1616 = vtanh.pop %v1614
        %v1617 = vadd.f32 %v1615, 1.0
        %v1618 = vadd.f32 %v1616, 1.0
        %v1619 = vmul.f32 %v1603, %v1617
        %v1620 = vmul.f32 %v1604, %v1618
        %s1621 = scalar_lea.vmem %s14, 128
        %v1622 = vld [vmem:[%s1621] sm:$0xff]
        %v1623 = vld [vmem:[%s1621 + $0x8] sm:$0xff]
        %v1624 = vld [vmem:[%s1621 + $0x10] sm:$0xff]
        %v1625 = vld [vmem:[%s1621 + $0x18] sm:$0xff]
        %v1626 = vld [vmem:[%s1621 + $0x20] sm:$0xff]
        %v1627 = vld [vmem:[%s1621 + $0x28] sm:$0xff]
        %v1628 = vld [vmem:[%s1621 + $0x30] sm:$0xff]
        %v1629 = vld [vmem:[%s1621 + $0x38] sm:$0xff]
        %v1630 = vld [vmem:[%s1621 + $0x40] sm:$0xff]
        %v1631 = vld [vmem:[%s1621 + $0x48] sm:$0xff]
        %v1632 = vld [vmem:[%s1621 + $0x50] sm:$0xff]
        %v1633 = vld [vmem:[%s1621 + $0x58] sm:$0xff]
        %v1634 = vld [vmem:[%s1621 + $0x60] sm:$0xff]
        %v1635 = vld [vmem:[%s1621 + $0x68] sm:$0xff]
        %v1636 = vld [vmem:[%s1621 + $0x70] sm:$0xff]
        %v1637 = vld [vmem:[%s1621 + $0x78] sm:$0xff]
        %s1638 = scalar_lea.vmem %s15, 1
        %v1639 = vld [vmem:[%s1638] sm:$0x1]
        %v1641 = vperm.slane %v1639, 0
        %1643 = vmatpush.msra.mxu0 %v1637
        %1644 = vmatpush.msra.mxu0 %v1636
        %1645 = vmatpush.msra.mxu0 %v1635
        %1646 = vmatpush.msra.mxu0 %v1634
        %1647 = vmatpush.msra.mxu0 %v1633
        %1648 = vmatpush.msra.mxu0 %v1632
        %1649 = vmatpush.msra.mxu0 %v1631
        %1650 = vmatpush.msra.mxu0 %v1630
        %1651 = vmatpush.msra.mxu0 %v1629
        %1652 = vmatpush.msra.mxu0 %v1628
        %1653 = vmatpush.msra.mxu0 %v1627
        %1654 = vmatpush.msra.mxu0 %v1626
        %1655 = vmatpush.msra.mxu0 %v1625
        %1656 = vmatpush.msra.mxu0 %v1624
        %1657 = vmatpush.msra.mxu0 %v1623
        %1658 = vmatpush.msra.mxu0 %v1622
        %1659 = vmatmul.f32.gmra.mxu0 %v1619
        %v1660 = vpop.f32.mrf.mxu0
        %v1661 = vadd.f32 %v1641, %v1660
        %1662 = vmatmul.f32.gmra.mxu0 %v1620
        %v1663 = vpop.f32.mrf.mxu0
        %v1664 = vadd.f32 %v1641, %v1663
        %1665 = vdwg.mxu0
        %v1666 = vadd.f32 %v1504, %v1661
        %v1667 = vadd.f32 %v1505, %v1664
        %v1668 = vsel %vm623, %v1666, 0.0
        %v1669 = vsel %vm623, %v1667, 0.0
        %v1670 = vadd.f32 %v1668, %v1669
        %v1671 = vrot.slane %v1670, 4
        %v1672 = vadd.f32 %v1670, %v1671
        %v1673 = vrot.slane %v1672, 2
        %v1674 = vadd.f32 %v1672, %v1673
        %v1675 = vrot.slane %v1674, 1
        %v1676 = vadd.f32 %v1674, %v1675
        %v1677 = vrcp.pop 16.0
        %v1678 = vmul.f32 16.0, %v1677
        %v1679 = vsub.f32 1.0, %v1678
        %v1680 = vmul.f32 %v1677, %v1679
        %v1681 = vadd.f32 %v1677, %v1680
        %vm1682 = vweird.f32 %v1677
        %v1683 = vsel %vm1682, %v1677, %v1681
        %v1684 = vmul.f32 %v1676, %v1683
        %v1685 = vld [vmem:[%s16] sm:$0x1]
        %v1686 = vld [vmem:[%s17] sm:$0x1]
        %v1687 = vsel %vm623, %v1684, 0.0
        %1688 = vadd.xlane.f32.xlu0 %v1687
        %v1689 = vpop.xlane.xlu0 %1688
        %v1690 = vmul.f32 %v1689, %v636
        %v1691 = vsub.f32 %v1684, %v1690
        %v1692 = vmul.f32 %v1691, %v1691
        %v1693 = vsel %vm623, %v1692, 0.0
        %1694 = vadd.xlane.f32.xlu0 %v1693
        %v1695 = vpop.xlane.xlu0 %1694
        %v1696 = vmul.f32 %v1695, %v636
        %v1697 = vadd.f32 %v1696, 1e-06
        %v1698 = vrsqrt.pop %v1697
        %v1699 = vmul.f32 %v1698, %v1697
        %v1700 = vmul.f32 %v1699, %v1698
        %v1701 = vmul.f32 0.5, %v1700
        %v1702 = vsub.f32 1.5, %v1701
        %v1703 = vmul.f32 %v1698, %v1702
        %vm1704 = vweird.f32 %v1697
        %vm1705 = vweird.f32 %v1698
        %vm1706 = vmor %vm1704, %vm1705
        %v1707 = vsel %vm1706, %v1698, %v1703
        %v1708 = vmul.f32 %v1691, %v1707
        %v1709 = vmul.f32 %v1708, %v1685
        %v1710 = vadd.f32 %v1709, %v1686
        %vm1711 = vcmask 253952
        %1712 = vst.msk [vmem:[%s567] sm:$0x1] %vm1711, %v1710
        %s1713 = sand.u32 %s423, 1
        %s1714 = scalar_lea.sflag [#allocation3], %s1713
        %s1715 = sand.u32 %s423, 1
        %s1716 = scalar_lea.vmem [#allocation2], %s1715
        // Predicated region
        $region93: #{simvit_wrapper_forward.1} parent=91 // pred_check
          %p1717 = pneg %p433
        $region94: #{simvit_wrapper_forward.1} parent=91 // pred_check_branch
          %1719 = sbr.rel (%p1717) target = $region96
        $region95: #{simvit_wrapper_forward.1} parent=91 // pred_region
          %1721 = vsyncadd %s1714, 0
          %s1722 = scalar_lea.hbm %s18, %s32
          %s1724 = sshll.u32 %s1716, 4
          %s1725 = int_to_ptr.vmem [resolvable:$true] %s1724
          %s1726 = sshll.u32 %s1722, 4
          %s1727 = int_to_ptr.hbm [resolvable:$true] %s1726
          %1729 = dma.vmem_to_hbm [thread:$0]  %s1725, 16, %s1727, %s1714
        $region96: #{simvit_wrapper_forward.1} parent=91 // pred_fallthru
          _
      $region92: #{simvit_wrapper_forward.1} parent=5 // pred_fallthru
        _
      %p1730 = scmp.le.s32.totalorder 2, %s27
      // Predicated region
      $region97: #{simvit_wrapper_forward.1} parent=5 // pred_check
        %p1731 = pneg %p1730
      $region98: #{simvit_wrapper_forward.1} parent=5 // pred_check_branch
        %1733 = sbr.rel (%p1731) target = $region100
      $region99: #{simvit_wrapper_forward.1} parent=5 // pred_region
        %s1734 = ssub.s32 %s27, 2
        // Predicated region
        $region101: #{simvit_wrapper_forward.1} parent=99 // pred_check
          %p1735 = pneg %p439
        $region102: #{simvit_wrapper_forward.1} parent=99 // pred_check_branch
          %1737 = sbr.rel (%p1735) target = $region104
        $region103: #{simvit_wrapper_forward.1} parent=99 // pred_region
          %s1738 = sand.u32 %s424, 1
          %s1739 = scalar_lea.sflag [#allocation3], %s1738
          %s1740 = sand.u32 %s424, 1
          %s1741 = scalar_lea.vmem [#allocation2], %s1740
          %1743 = dma.done %s1739, 16
        $region104: #{simvit_wrapper_forward.1} parent=99 // pred_fallthru
          _
      $region100: #{simvit_wrapper_forward.1} parent=5 // pred_fallthru
        _
    $region6: #{simvit_wrapper_forward.1} parent=1 // loop_footer
      %s31 = sadd.s32 1, %s27
    $region7: #{simvit_wrapper_forward.1} parent=1 // loop_footer_branch
      %26 = sbr.rel target = $region3
    $region8: #{simvit_wrapper_forward.1} parent=1 // loop_exit
      _
    %1744 = vsyncpa [#allocation3], 1
    %s1745 = scalar_lea.sflag [#allocation3], 1
    %1746 = vsyncpa %s1745, 1

</llo_original>
